<compile_context>
chip_gen: v5e
topology: v5e:2x2
jax: 0.10.0
libtpu: 0.0.40
codegen_flags: <defaults>
</compile_context>

<pallas_src>
import jax
import jax.numpy as jnp
from jax.experimental import pallas as pl
from jax.experimental.pallas import tpu as pltpu

EMB_DIM = 250


def _round_up(x, m):
    return ((x + m - 1) // m) * m


def _make_kernel(col_layout):
    """col_layout: tuple of (row_offset, vc_pad) static per-column slots in mh."""

    def kernel(xT_ref, mT_ref, b1_ref, w2_ref, b2_ref, w3_ref, b3_ref,
               w4c_ref, b4_ref, outT_ref, mh_ref):
        # xT_ref:  (C, TB)          int32 per-column LOCAL indices
        # mT_ref:  (128, sumVpad)   bf16 fused W1_c @ table_c^T blocks (padded)
        # w2/w3:   (out, in)        bf16 torch-layout weights
        # w4c_ref: (32, 1)          f32 final-layer weight column
        # b*_ref:  (out, 1)         f32 bias columns
        # outT_ref:(1, TB)          f32 sigmoid outputs (lane-dense slab)
        # mh_ref:  (sumVpad, TB)    bf16 scratch multi-hot
        ids = xT_ref[...]
        tb = ids.shape[1]

        # Per-column one-hot written straight into its own sub-range of the
        # scratch: one compare + one bf16 cast per column, no full-height iota
        # passes and no f32 accumulate round trip.  Slots cover the whole
        # scratch, so every row is rewritten each grid step (no stale data);
        # out-of-range ids simply match nothing -> zero embedding row.
        for c, (off, vc_pad) in enumerate(col_layout):
            iota = jax.lax.broadcasted_iota(jnp.int32, (vc_pad, tb), 0)
            mh_ref[off:off + vc_pad, :] = (
                iota == ids[c:c + 1, :]).astype(mh_ref.dtype)

        # Fused embedding+concat+Linear1, then the rest of the MLP, all in the
        # transposed domain (features on sublanes, batch on the 128-lane axis;
        # bias columns broadcast along the lane/batch axis).
        h = jnp.dot(mT_ref[...], mh_ref[...],
                    preferred_element_type=jnp.float32) + b1_ref[...]
        h = jnp.maximum(h, 0.0)
        h = jnp.dot(w2_ref[...], h.astype(w2_ref.dtype),
                    preferred_element_type=jnp.float32) + b2_ref[...]
        h = jnp.maximum(h, 0.0)
        h = jnp.dot(w3_ref[...], h.astype(w3_ref.dtype),
                    preferred_element_type=jnp.float32) + b3_ref[...]
        h = jnp.maximum(h, 0.0)
        # Final 1-row layer on the VPU/XLU (multiply + sublane reduce) instead
        # of a 1/256-utilized MXU matmul; f32 -> no extra rounding here.
        logits = jnp.sum(w4c_ref[...] * h, axis=0, keepdims=True) + b4_ref[...]
        outT_ref[...] = jax.nn.sigmoid(logits)              # (1, TB)

    return kernel


def mymodel_forward(x, tables, weights, biases, *, block_b=2048,
                    vmem_budget_bytes=48 << 20):
    """Forward pass of Mymodel (eval).

    x:       (B, C) categorical indices (float or int; cast like X.long()).
    tables:  list of C embedding tables, table_c: (V_c, 250) float32.
    weights: [W1 (128, C*250), W2 (64, 128), W3 (32, 64), W4 (1, 32)] (out, in).
    biases:  [b1 (128,), b2 (64,), b3 (32,), b4 (1,)].
    returns: (B, 1) float32.
    """
    n_cols = len(tables)
    batch = x.shape[0]
    emb_dim = tables[0].shape[1]
    w1, w2, w3, w4 = weights
    b1, b2, b3, b4 = biases
    d1, d2, d3 = w1.shape[0], w2.shape[0], w3.shape[0]

    # --- Algebraic fusion:
    #   concat_c(table_c[x_c]) @ W1^T == sum_c onehot(x_c) @ (table_c @ W1_c^T)
    # Each column gets its own sublane-aligned slot (multiple of 16 = bf16
    # packed sublane tile); the last slot absorbs the pad that lane-aligns the
    # total one-hot axis to 128.
    vc_pads = [_round_up(int(t.shape[0]), 16) for t in tables]
    total = sum(vc_pads)
    total_pad = _round_up(total, 128)
    vc_pads[-1] += total_pad - total

    mt_blocks, col_layout, row_off = [], [], 0
    for c, tab in enumerate(tables):
        w1_c = w1[:, c * emb_dim:(c + 1) * emb_dim].astype(jnp.float32)
        blk = w1_c @ tab.astype(jnp.float32).T               # (d1, V_c)
        blk = jnp.pad(blk, ((0, 0), (0, vc_pads[c] - tab.shape[0])))
        mt_blocks.append(blk)
        col_layout.append((row_off, vc_pads[c]))
        row_off += vc_pads[c]
    mt = jnp.concatenate(mt_blocks, axis=1).astype(jnp.bfloat16)  # (d1,total_pad)

    # bf16 weights (f32 accumulation in-kernel); final layer + biases stay f32.
    w2b = w2.astype(jnp.bfloat16)
    w3b = w3.astype(jnp.bfloat16)
    w4c = w4.reshape(-1, 1).astype(jnp.float32)              # (32, 1) column
    b1c = b1.reshape(-1, 1).astype(jnp.float32)
    b2c = b2.reshape(-1, 1).astype(jnp.float32)
    b3c = b3.reshape(-1, 1).astype(jnp.float32)
    b4c = b4.reshape(-1, 1).astype(jnp.float32)

    # --- Batch tiling: big 256-aligned lane-dense tiles (v6e/v7x MXU width),
    # bounded by a conservative VMEM budget, and >=2 tiles when possible so
    # both v7x TensorCores get grid iterations.
    n_cols_pad = _round_up(n_cols, 8)

    def per_tile_bytes(tb):
        mh = total_pad * tb * 2                               # bf16 scratch
        acts = (d1 + d2 + d3 + 8) * tb * 4                    # f32 activations
        io = 2 * (n_cols_pad * tb * 4 + 8 * tb * 4)           # dbl-buffered idx/out
        return mh + acts + io

    # mT + small weights / padded bias columns (conservatively x2 buffers).
    const_bytes = mt.size * 2 + (256 << 10)

    tb = min(block_b, _round_up(batch, 256))
    while tb > 256 and per_tile_bytes(tb) + 2 * const_bytes > vmem_budget_bytes:
        tb -= 256
    if tb > 256 and _round_up(batch, tb) // tb < 2:
        tb = _round_up((tb + 1) // 2, 256)                    # >=2 tiles (megacore)
    b_pad = _round_up(batch, tb)

    vmem_limit = int(1.5 * (per_tile_bytes(tb) + 2 * const_bytes)) + (8 << 20)
    vmem_limit = max(32 << 20, min(vmem_limit, 128 << 20))

    # Per-column LOCAL indices, batch on the lane axis, padded to a tile mult.
    # Padded lanes hold 0 (valid row of every column) -> finite garbage in the
    # padded lanes only; they are sliced off below.  Never normalize by mh.
    idx_t = jnp.pad(x.astype(jnp.int32).T, ((0, 0), (0, b_pad - batch)))

    kernel = _make_kernel(tuple(col_layout))
    consts = (mt, b1c, w2b, b2c, w3b, b3c, w4c, b4c)

    def call(single_buffer_consts):
        kwargs = ({"pipeline_mode": pl.Buffered(buffer_count=1)}
                  if single_buffer_consts else {})

        def const_spec(a):
            return pl.BlockSpec(a.shape, lambda i: (0, 0), **kwargs)

        return pl.pallas_call(
            kernel,
            out_shape=jax.ShapeDtypeStruct((1, b_pad), jnp.float32),
            grid=(b_pad // tb,),
            in_specs=[pl.BlockSpec((n_cols, tb), lambda i: (0, i))]
                     + [const_spec(a) for a in consts],
            out_specs=pl.BlockSpec((1, tb), lambda i: (0, i)),   # lane-dense slab
            scratch_shapes=[pltpu.VMEM((total_pad, tb), jnp.bfloat16)],
            compiler_params=pltpu.CompilerParams(
                dimension_semantics=("parallel",),
                vmem_limit_bytes=vmem_limit),
        )(idx_t, *consts)

    try:
        # Grid-invariant operands (index_map == (0,0)) only need one buffer.
        out_t = call(True)
    except Exception:  # pragma: no cover - jax without Buffered(1) support
        out_t = call(False)

    return out_t[0, :batch].reshape(batch, 1)


def _reference(x, tables, weights, biases):
    """Unfused pure-JAX f32 reference matching the PyTorch forward (eval)."""
    idx = x.astype(jnp.int32)
    embs = [tables[c][idx[:, c]] for c in range(len(tables))]
    h = jnp.concatenate(embs, axis=1)
    w1, w2, w3, w4 = weights
    b1, b2, b3, b4 = biases
    h = jnp.maximum(h @ w1.T + b1, 0.0)
    h = jnp.maximum(h @ w2.T + b2, 0.0)
    h = jnp.maximum(h @ w3.T + b3, 0.0)
    return jax.nn.sigmoid(h @ w4.T + b4)


if __name__ == "__main__":
    key = jax.random.PRNGKey(0)
    keys = iter(jax.random.split(key, 32))

    # Small synthetic config: 3 embed columns with small vocabularies.
    vocab_sizes = [11, 7, 5]
    n_cols = len(vocab_sizes)

    tables = [
        jax.random.normal(next(keys), (v, EMB_DIM), jnp.float32) * 0.05
        for v in vocab_sizes
    ]

    # Torch-layout weights (out, in) and 1-D biases.
    layer_dims = [(n_cols * EMB_DIM, 128), (128, 64), (64, 32), (32, 1)]
    weights, biases = [], []
    for d_in, d_out in layer_dims:
        weights.append(
            jax.random.normal(next(keys), (d_out, d_in), jnp.float32) * 0.05)
        biases.append(
            jax.random.normal(next(keys), (d_out,), jnp.float32) * 0.01)

    # --- Case 1: tiny batch (single tile).
    batch = 8
    cols = [
        jax.random.randint(next(keys), (batch,), 0, v, jnp.int32)
        for v in vocab_sizes
    ]
    x = jnp.stack(cols, axis=1).astype(jnp.float32)     # (B, C), passed as float
    out = jax.block_until_ready(mymodel_forward(x, tables, weights, biases))
    ref = _reference(x, tables, weights, biases)
    assert out.shape == (batch, 1)
    assert bool(jnp.all(jnp.isfinite(out)))
    assert bool(jnp.all((out > 0.0) & (out < 1.0)))
    assert float(jnp.max(jnp.abs(out - ref))) < 2e-2    # bf16 weight rounding only

    # --- Case 2: batch that doesn't divide the tile (exercises padding and the
    # >=2-tile megacore split path).
    batch2 = 300
    cols2 = [
        jax.random.randint(next(keys), (batch2,), 0, v, jnp.int32)
        for v in vocab_sizes
    ]
    x2 = jnp.stack(cols2, axis=1).astype(jnp.float32)
    out2 = jax.block_until_ready(mymodel_forward(x2, tables, weights, biases))
    ref2 = _reference(x2, tables, weights, biases)
    assert out2.shape == (batch2, 1)
    assert float(jnp.max(jnp.abs(out2 - ref2))) < 2e-2

    print("KERNEL_OK")
</pallas_src>

<mosaic_0001>
module attributes {stable_mosaic.version = 11 : i64} {
  func.func @kernel(%arg0: i32, %arg1: memref<3x256xi32, #tpu.memory_space<vmem>>, %arg2: memref<128x128xbf16, #tpu.memory_space<vmem>>, %arg3: memref<128x1xf32, #tpu.memory_space<vmem>>, %arg4: memref<64x128xbf16, #tpu.memory_space<vmem>>, %arg5: memref<64x1xf32, #tpu.memory_space<vmem>>, %arg6: memref<32x64xbf16, #tpu.memory_space<vmem>>, %arg7: memref<32x1xf32, #tpu.memory_space<vmem>>, %arg8: memref<32x1xf32, #tpu.memory_space<vmem>>, %arg9: memref<1x1xf32, #tpu.memory_space<vmem>>, %arg10: memref<1x256xf32, #tpu.memory_space<vmem>>, %arg11: memref<128x256xbf16, #tpu.memory_space<vmem>>) attributes {dimension_semantics = [#tpu.dimension_semantics<parallel>], iteration_bounds = array<i64: 1>, scalar_prefetch = 0 : i64, scratch_operands = 1 : i64, tpu.core_type = #tpu.core_type<tc>, window_params = [{transform_indices = @transform_0, window_bounds = array<i64: 3, 256>}, {pipeline_mode = #tpu.pipeline_mode<synchronous>, transform_indices = @transform_1, window_bounds = array<i64: 128, 128>}, {pipeline_mode = #tpu.pipeline_mode<synchronous>, transform_indices = @transform_2, window_bounds = array<i64: 128, 1>}, {pipeline_mode = #tpu.pipeline_mode<synchronous>, transform_indices = @transform_3, window_bounds = array<i64: 64, 128>}, {pipeline_mode = #tpu.pipeline_mode<synchronous>, transform_indices = @transform_4, window_bounds = array<i64: 64, 1>}, {pipeline_mode = #tpu.pipeline_mode<synchronous>, transform_indices = @transform_5, window_bounds = array<i64: 32, 64>}, {pipeline_mode = #tpu.pipeline_mode<synchronous>, transform_indices = @transform_6, window_bounds = array<i64: 32, 1>}, {pipeline_mode = #tpu.pipeline_mode<synchronous>, transform_indices = @transform_7, window_bounds = array<i64: 32, 1>}, {pipeline_mode = #tpu.pipeline_mode<synchronous>, transform_indices = @transform_8, window_bounds = array<i64: 1, 1>}, {transform_indices = @transform_9, window_bounds = array<i64: 1, 256>}]} {
    %c0 = arith.constant 0 : index
    %c0_0 = arith.constant 0 : index
    %0 = vector.load %arg1[%c0, %c0_0] : memref<3x256xi32, #tpu.memory_space<vmem>>, vector<3x256xi32>
    %1 = tpu.iota {dimensions = array<i32: 0>} : vector<16x256xi32>
    %2 = vector.extract_strided_slice %0 {offsets = [0, 0], sizes = [1, 256], strides = [1, 1]} : vector<3x256xi32> to vector<1x256xi32>
    %3 = vector.broadcast %2 : vector<1x256xi32> to vector<16x256xi32>
    %4 = arith.cmpi eq, %1, %3 : vector<16x256xi32>
    %5 = arith.extui %4 : vector<16x256xi1> to vector<16x256xi32>
    %6 = arith.sitofp %5 : vector<16x256xi32> to vector<16x256xf32>
    %7 = arith.truncf %6 : vector<16x256xf32> to vector<16x256xbf16>
    %c0_1 = arith.constant 0 : index
    %c0_2 = arith.constant 0 : index
    %8 = vector.load %arg11[%c0_1, %c0_2] : memref<128x256xbf16, #tpu.memory_space<vmem>>, vector<16x256xbf16>
    tpu.vector_store %arg11[%c0_1, %c0_2], %7 {strides = array<i32>} : memref<128x256xbf16, #tpu.memory_space<vmem>>, vector<16x256xbf16>,
    %9 = tpu.iota {dimensions = array<i32: 0>} : vector<16x256xi32>
    %10 = vector.extract_strided_slice %0 {offsets = [1, 0], sizes = [1, 256], strides = [1, 1]} : vector<3x256xi32> to vector<1x256xi32>
    %11 = vector.broadcast %10 : vector<1x256xi32> to vector<16x256xi32>
    %12 = arith.cmpi eq, %9, %11 : vector<16x256xi32>
    %13 = arith.extui %12 : vector<16x256xi1> to vector<16x256xi32>
    %14 = arith.sitofp %13 : vector<16x256xi32> to vector<16x256xf32>
    %15 = arith.truncf %14 : vector<16x256xf32> to vector<16x256xbf16>
    %c16 = arith.constant 16 : index
    %c0_3 = arith.constant 0 : index
    %16 = vector.load %arg11[%c16, %c0_3] : memref<128x256xbf16, #tpu.memory_space<vmem>>, vector<16x256xbf16>
    tpu.vector_store %arg11[%c16, %c0_3], %15 {strides = array<i32>} : memref<128x256xbf16, #tpu.memory_space<vmem>>, vector<16x256xbf16>,
    %17 = tpu.iota {dimensions = array<i32: 0>} : vector<96x256xi32>
    %18 = vector.extract_strided_slice %0 {offsets = [2, 0], sizes = [1, 256], strides = [1, 1]} : vector<3x256xi32> to vector<1x256xi32>
    %19 = vector.broadcast %18 : vector<1x256xi32> to vector<96x256xi32>
    %20 = arith.cmpi eq, %17, %19 : vector<96x256xi32>
    %21 = arith.extui %20 : vector<96x256xi1> to vector<96x256xi32>
    %22 = arith.sitofp %21 : vector<96x256xi32> to vector<96x256xf32>
    %23 = arith.truncf %22 : vector<96x256xf32> to vector<96x256xbf16>
    %c32 = arith.constant 32 : index
    %c0_4 = arith.constant 0 : index
    %24 = vector.load %arg11[%c32, %c0_4] : memref<128x256xbf16, #tpu.memory_space<vmem>>, vector<96x256xbf16>
    tpu.vector_store %arg11[%c32, %c0_4], %23 {strides = array<i32>} : memref<128x256xbf16, #tpu.memory_space<vmem>>, vector<96x256xbf16>,
    %c0_5 = arith.constant 0 : index
    %c0_6 = arith.constant 0 : index
    %25 = vector.load %arg2[%c0_5, %c0_6] : memref<128x128xbf16, #tpu.memory_space<vmem>>, vector<128x128xbf16>
    %c0_7 = arith.constant 0 : index
    %c0_8 = arith.constant 0 : index
    %26 = vector.load %arg11[%c0_7, %c0_8] : memref<128x256xbf16, #tpu.memory_space<vmem>>, vector<128x256xbf16>
    %cst = arith.constant dense<0.000000e+00> : vector<128x256xf32>
    %27 = tpu.matmul %25, %26, %cst {dimension_numbers = #tpu.dot_dimension_numbers<[1], [0], [0], [1], [0, 0, 1, 1], [], []>} : vector<128x128xbf16>, vector<128x256xbf16>, vector<128x256xf32> -> vector<128x256xf32>
    %c0_9 = arith.constant 0 : index
    %c0_10 = arith.constant 0 : index
    %28 = vector.load %arg3[%c0_9, %c0_10] : memref<128x1xf32, #tpu.memory_space<vmem>>, vector<128x1xf32>
    %29 = vector.broadcast %28 : vector<128x1xf32> to vector<128x256xf32>
    %30 = arith.addf %27, %29 : vector<128x256xf32>
    %cst_11 = arith.constant 0.000000e+00 : f32
    %31 = vector.broadcast %cst_11 : f32 to vector<128x256xf32>
    %32 = arith.maximumf %30, %31 : vector<128x256xf32>
    %c0_12 = arith.constant 0 : index
    %c0_13 = arith.constant 0 : index
    %33 = vector.load %arg4[%c0_12, %c0_13] : memref<64x128xbf16, #tpu.memory_space<vmem>>, vector<64x128xbf16>
    %34 = arith.truncf %32 : vector<128x256xf32> to vector<128x256xbf16>
    %cst_14 = arith.constant dense<0.000000e+00> : vector<64x256xf32>
    %35 = tpu.matmul %33, %34, %cst_14 {dimension_numbers = #tpu.dot_dimension_numbers<[1], [0], [0], [1], [0, 0, 1, 1], [], []>} : vector<64x128xbf16>, vector<128x256xbf16>, vector<64x256xf32> -> vector<64x256xf32>
    %c0_15 = arith.constant 0 : index
    %c0_16 = arith.constant 0 : index
    %36 = vector.load %arg5[%c0_15, %c0_16] : memref<64x1xf32, #tpu.memory_space<vmem>>, vector<64x1xf32>
    %37 = vector.broadcast %36 : vector<64x1xf32> to vector<64x256xf32>
    %38 = arith.addf %35, %37 : vector<64x256xf32>
    %cst_17 = arith.constant 0.000000e+00 : f32
    %39 = vector.broadcast %cst_17 : f32 to vector<64x256xf32>
    %40 = arith.maximumf %38, %39 : vector<64x256xf32>
    %c0_18 = arith.constant 0 : index
    %c0_19 = arith.constant 0 : index
    %41 = vector.load %arg6[%c0_18, %c0_19] : memref<32x64xbf16, #tpu.memory_space<vmem>>, vector<32x64xbf16>
    %42 = arith.truncf %40 : vector<64x256xf32> to vector<64x256xbf16>
    %cst_20 = arith.constant dense<0.000000e+00> : vector<32x256xf32>
    %43 = tpu.matmul %41, %42, %cst_20 {dimension_numbers = #tpu.dot_dimension_numbers<[1], [0], [0], [1], [0, 0, 1, 1], [], []>} : vector<32x64xbf16>, vector<64x256xbf16>, vector<32x256xf32> -> vector<32x256xf32>
    %c0_21 = arith.constant 0 : index
    %c0_22 = arith.constant 0 : index
    %44 = vector.load %arg7[%c0_21, %c0_22] : memref<32x1xf32, #tpu.memory_space<vmem>>, vector<32x1xf32>
    %45 = vector.broadcast %44 : vector<32x1xf32> to vector<32x256xf32>
    %46 = arith.addf %43, %45 : vector<32x256xf32>
    %cst_23 = arith.constant 0.000000e+00 : f32
    %47 = vector.broadcast %cst_23 : f32 to vector<32x256xf32>
    %48 = arith.maximumf %46, %47 : vector<32x256xf32>
    %c0_24 = arith.constant 0 : index
    %c0_25 = arith.constant 0 : index
    %49 = vector.load %arg8[%c0_24, %c0_25] : memref<32x1xf32, #tpu.memory_space<vmem>>, vector<32x1xf32>
    %50 = vector.broadcast %49 : vector<32x1xf32> to vector<32x256xf32>
    %51 = arith.mulf %50, %48 : vector<32x256xf32>
    %cst_26 = arith.constant dense<0.000000e+00> : vector<256xf32>
    %52 = vector.multi_reduction <add>, %51, %cst_26 [0] : vector<32x256xf32> to vector<256xf32>
    %53 = vector.shape_cast %52 : vector<256xf32> to vector<1x256xf32>
    %c0_27 = arith.constant 0 : index
    %c0_28 = arith.constant 0 : index
    %54 = vector.load %arg9[%c0_27, %c0_28] : memref<1x1xf32, #tpu.memory_space<vmem>>, vector<1x1xf32>
    %55 = vector.broadcast %54 : vector<1x1xf32> to vector<1x256xf32>
    %56 = arith.addf %53, %55 : vector<1x256xf32>
    %57 = arith.negf %56 : vector<1x256xf32>
    %58 = math.exp %57 : vector<1x256xf32>
    %cst_29 = arith.constant 1.000000e+00 : f32
    %59 = vector.broadcast %cst_29 : f32 to vector<1x256xf32>
    %60 = arith.addf %59, %58 : vector<1x256xf32>
    %61 = arith.divf %59, %60 : vector<1x256xf32>
    %c0_30 = arith.constant 0 : index
    %c0_31 = arith.constant 0 : index
    %62 = vector.load %arg10[%c0_30, %c0_31] : memref<1x256xf32, #tpu.memory_space<vmem>>, vector<1x256xf32>
    tpu.vector_store %arg10[%c0_30, %c0_31], %61 {strides = array<i32>} : memref<1x256xf32, #tpu.memory_space<vmem>>, vector<1x256xf32>,
    return
  }
  func.func @transform_0(%arg0: i32) -> (i32, i32) {
    %c0_i32 = arith.constant 0 : i32
    %c0_i32_0 = arith.constant 0 : i32
    return %c0_i32, %arg0 : i32, i32
  }
  func.func @transform_1(%arg0: i32) -> (i32, i32) {
    %c0_i32 = arith.constant 0 : i32
    %c0_i32_0 = arith.constant 0 : i32
    %c0_i32_1 = arith.constant 0 : i32
    return %c0_i32, %c0_i32_0 : i32, i32
  }
  func.func @transform_2(%arg0: i32) -> (i32, i32) {
    %c0_i32 = arith.constant 0 : i32
    %c0_i32_0 = arith.constant 0 : i32
    %c0_i32_1 = arith.constant 0 : i32
    return %c0_i32, %c0_i32_0 : i32, i32
  }
  func.func @transform_3(%arg0: i32) -> (i32, i32) {
    %c0_i32 = arith.constant 0 : i32
    %c0_i32_0 = arith.constant 0 : i32
    %c0_i32_1 = arith.constant 0 : i32
    return %c0_i32, %c0_i32_0 : i32, i32
  }
  func.func @transform_4(%arg0: i32) -> (i32, i32) {
    %c0_i32 = arith.constant 0 : i32
    %c0_i32_0 = arith.constant 0 : i32
    %c0_i32_1 = arith.constant 0 : i32
    return %c0_i32, %c0_i32_0 : i32, i32
  }
  func.func @transform_5(%arg0: i32) -> (i32, i32) {
    %c0_i32 = arith.constant 0 : i32
    %c0_i32_0 = arith.constant 0 : i32
    %c0_i32_1 = arith.constant 0 : i32
    return %c0_i32, %c0_i32_0 : i32, i32
  }
  func.func @transform_6(%arg0: i32) -> (i32, i32) {
    %c0_i32 = arith.constant 0 : i32
    %c0_i32_0 = arith.constant 0 : i32
    %c0_i32_1 = arith.constant 0 : i32
    return %c0_i32, %c0_i32_0 : i32, i32
  }
  func.func @transform_7(%arg0: i32) -> (i32, i32) {
    %c0_i32 = arith.constant 0 : i32
    %c0_i32_0 = arith.constant 0 : i32
    %c0_i32_1 = arith.constant 0 : i32
    return %c0_i32, %c0_i32_0 : i32, i32
  }
  func.func @transform_8(%arg0: i32) -> (i32, i32) {
    %c0_i32 = arith.constant 0 : i32
    %c0_i32_0 = arith.constant 0 : i32
    %c0_i32_1 = arith.constant 0 : i32
    return %c0_i32, %c0_i32_0 : i32, i32
  }
  func.func @transform_9(%arg0: i32) -> (i32, i32) {
    %c0_i32 = arith.constant 0 : i32
    %c0_i32_0 = arith.constant 0 : i32
    return %c0_i32, %arg0 : i32, i32
  }
}

module attributes {stable_mosaic.version = 11 : i64} {
  func.func @kernel(%arg0: i32, %arg1: memref<3x256xi32, #tpu.memory_space<vmem>>, %arg2: memref<128x128xbf16, #tpu.memory_space<vmem>>, %arg3: memref<128x1xf32, #tpu.memory_space<vmem>>, %arg4: memref<64x128xbf16, #tpu.memory_space<vmem>>, %arg5: memref<64x1xf32, #tpu.memory_space<vmem>>, %arg6: memref<32x64xbf16, #tpu.memory_space<vmem>>, %arg7: memref<32x1xf32, #tpu.memory_space<vmem>>, %arg8: memref<32x1xf32, #tpu.memory_space<vmem>>, %arg9: memref<1x1xf32, #tpu.memory_space<vmem>>, %arg10: memref<1x256xf32, #tpu.memory_space<vmem>>, %arg11: memref<128x256xbf16, #tpu.memory_space<vmem>>) attributes {dimension_semantics = [#tpu.dimension_semantics<parallel>], iteration_bounds = array<i64: 1>, scalar_prefetch = 0 : i64, scratch_operands = 1 : i64, tpu.core_type = #tpu.core_type<tc>, window_params = [{transform_indices = @transform_0, window_bounds = array<i64: 3, 256>}, {pipeline_mode = #tpu.pipeline_mode<synchronous>, transform_indices = @transform_1, window_bounds = array<i64: 128, 128>}, {pipeline_mode = #tpu.pipeline_mode<synchronous>, transform_indices = @transform_2, window_bounds = array<i64: 128, 1>}, {pipeline_mode = #tpu.pipeline_mode<synchronous>, transform_indices = @transform_3, window_bounds = array<i64: 64, 128>}, {pipeline_mode = #tpu.pipeline_mode<synchronous>, transform_indices = @transform_4, window_bounds = array<i64: 64, 1>}, {pipeline_mode = #tpu.pipeline_mode<synchronous>, transform_indices = @transform_5, window_bounds = array<i64: 32, 64>}, {pipeline_mode = #tpu.pipeline_mode<synchronous>, transform_indices = @transform_6, window_bounds = array<i64: 32, 1>}, {pipeline_mode = #tpu.pipeline_mode<synchronous>, transform_indices = @transform_7, window_bounds = array<i64: 32, 1>}, {pipeline_mode = #tpu.pipeline_mode<synchronous>, transform_indices = @transform_8, window_bounds = array<i64: 1, 1>}, {transform_indices = @transform_9, window_bounds = array<i64: 1, 256>}]} {
    %c0 = arith.constant 0 : index
    %c0_0 = arith.constant 0 : index
    %0 = vector.load %arg1[%c0, %c0_0] : memref<3x256xi32, #tpu.memory_space<vmem>>, vector<3x256xi32>
    %1 = tpu.iota {dimensions = array<i32: 0>} : vector<16x256xi32>
    %2 = vector.extract_strided_slice %0 {offsets = [0, 0], sizes = [1, 256], strides = [1, 1]} : vector<3x256xi32> to vector<1x256xi32>
    %3 = vector.broadcast %2 : vector<1x256xi32> to vector<16x256xi32>
    %4 = arith.cmpi eq, %1, %3 : vector<16x256xi32>
    %5 = arith.extui %4 : vector<16x256xi1> to vector<16x256xi32>
    %6 = arith.sitofp %5 : vector<16x256xi32> to vector<16x256xf32>
    %7 = arith.truncf %6 : vector<16x256xf32> to vector<16x256xbf16>
    %c0_1 = arith.constant 0 : index
    %c0_2 = arith.constant 0 : index
    %8 = vector.load %arg11[%c0_1, %c0_2] : memref<128x256xbf16, #tpu.memory_space<vmem>>, vector<16x256xbf16>
    tpu.vector_store %arg11[%c0_1, %c0_2], %7 {strides = array<i32>} : memref<128x256xbf16, #tpu.memory_space<vmem>>, vector<16x256xbf16>,
    %9 = tpu.iota {dimensions = array<i32: 0>} : vector<16x256xi32>
    %10 = vector.extract_strided_slice %0 {offsets = [1, 0], sizes = [1, 256], strides = [1, 1]} : vector<3x256xi32> to vector<1x256xi32>
    %11 = vector.broadcast %10 : vector<1x256xi32> to vector<16x256xi32>
    %12 = arith.cmpi eq, %9, %11 : vector<16x256xi32>
    %13 = arith.extui %12 : vector<16x256xi1> to vector<16x256xi32>
    %14 = arith.sitofp %13 : vector<16x256xi32> to vector<16x256xf32>
    %15 = arith.truncf %14 : vector<16x256xf32> to vector<16x256xbf16>
    %c16 = arith.constant 16 : index
    %c0_3 = arith.constant 0 : index
    %16 = vector.load %arg11[%c16, %c0_3] : memref<128x256xbf16, #tpu.memory_space<vmem>>, vector<16x256xbf16>
    tpu.vector_store %arg11[%c16, %c0_3], %15 {strides = array<i32>} : memref<128x256xbf16, #tpu.memory_space<vmem>>, vector<16x256xbf16>,
    %17 = tpu.iota {dimensions = array<i32: 0>} : vector<96x256xi32>
    %18 = vector.extract_strided_slice %0 {offsets = [2, 0], sizes = [1, 256], strides = [1, 1]} : vector<3x256xi32> to vector<1x256xi32>
    %19 = vector.broadcast %18 : vector<1x256xi32> to vector<96x256xi32>
    %20 = arith.cmpi eq, %17, %19 : vector<96x256xi32>
    %21 = arith.extui %20 : vector<96x256xi1> to vector<96x256xi32>
    %22 = arith.sitofp %21 : vector<96x256xi32> to vector<96x256xf32>
    %23 = arith.truncf %22 : vector<96x256xf32> to vector<96x256xbf16>
    %c32 = arith.constant 32 : index
    %c0_4 = arith.constant 0 : index
    %24 = vector.load %arg11[%c32, %c0_4] : memref<128x256xbf16, #tpu.memory_space<vmem>>, vector<96x256xbf16>
    tpu.vector_store %arg11[%c32, %c0_4], %23 {strides = array<i32>} : memref<128x256xbf16, #tpu.memory_space<vmem>>, vector<96x256xbf16>,
    %c0_5 = arith.constant 0 : index
    %c0_6 = arith.constant 0 : index
    %25 = vector.load %arg2[%c0_5, %c0_6] : memref<128x128xbf16, #tpu.memory_space<vmem>>, vector<128x128xbf16>
    %c0_7 = arith.constant 0 : index
    %c0_8 = arith.constant 0 : index
    %26 = vector.load %arg11[%c0_7, %c0_8] : memref<128x256xbf16, #tpu.memory_space<vmem>>, vector<128x256xbf16>
    %cst = arith.constant dense<0.000000e+00> : vector<128x256xf32>
    %27 = tpu.matmul %25, %26, %cst {dimension_numbers = #tpu.dot_dimension_numbers<[1], [0], [0], [1], [0, 0, 1, 1], [], []>} : vector<128x128xbf16>, vector<128x256xbf16>, vector<128x256xf32> -> vector<128x256xf32>
    %c0_9 = arith.constant 0 : index
    %c0_10 = arith.constant 0 : index
    %28 = vector.load %arg3[%c0_9, %c0_10] : memref<128x1xf32, #tpu.memory_space<vmem>>, vector<128x1xf32>
    %29 = vector.broadcast %28 : vector<128x1xf32> to vector<128x256xf32>
    %30 = arith.addf %27, %29 : vector<128x256xf32>
    %cst_11 = arith.constant 0.000000e+00 : f32
    %31 = vector.broadcast %cst_11 : f32 to vector<128x256xf32>
    %32 = arith.maximumf %30, %31 : vector<128x256xf32>
    %c0_12 = arith.constant 0 : index
    %c0_13 = arith.constant 0 : index
    %33 = vector.load %arg4[%c0_12, %c0_13] : memref<64x128xbf16, #tpu.memory_space<vmem>>, vector<64x128xbf16>
    %34 = arith.truncf %32 : vector<128x256xf32> to vector<128x256xbf16>
    %cst_14 = arith.constant dense<0.000000e+00> : vector<64x256xf32>
    %35 = tpu.matmul %33, %34, %cst_14 {dimension_numbers = #tpu.dot_dimension_numbers<[1], [0], [0], [1], [0, 0, 1, 1], [], []>} : vector<64x128xbf16>, vector<128x256xbf16>, vector<64x256xf32> -> vector<64x256xf32>
    %c0_15 = arith.constant 0 : index
    %c0_16 = arith.constant 0 : index
    %36 = vector.load %arg5[%c0_15, %c0_16] : memref<64x1xf32, #tpu.memory_space<vmem>>, vector<64x1xf32>
    %37 = vector.broadcast %36 : vector<64x1xf32> to vector<64x256xf32>
    %38 = arith.addf %35, %37 : vector<64x256xf32>
    %cst_17 = arith.constant 0.000000e+00 : f32
    %39 = vector.broadcast %cst_17 : f32 to vector<64x256xf32>
    %40 = arith.maximumf %38, %39 : vector<64x256xf32>
    %c0_18 = arith.constant 0 : index
    %c0_19 = arith.constant 0 : index
    %41 = vector.load %arg6[%c0_18, %c0_19] : memref<32x64xbf16, #tpu.memory_space<vmem>>, vector<32x64xbf16>
    %42 = arith.truncf %40 : vector<64x256xf32> to vector<64x256xbf16>
    %cst_20 = arith.constant dense<0.000000e+00> : vector<32x256xf32>
    %43 = tpu.matmul %41, %42, %cst_20 {dimension_numbers = #tpu.dot_dimension_numbers<[1], [0], [0], [1], [0, 0, 1, 1], [], []>} : vector<32x64xbf16>, vector<64x256xbf16>, vector<32x256xf32> -> vector<32x256xf32>
    %c0_21 = arith.constant 0 : index
    %c0_22 = arith.constant 0 : index
    %44 = vector.load %arg7[%c0_21, %c0_22] : memref<32x1xf32, #tpu.memory_space<vmem>>, vector<32x1xf32>
    %45 = vector.broadcast %44 : vector<32x1xf32> to vector<32x256xf32>
    %46 = arith.addf %43, %45 : vector<32x256xf32>
    %cst_23 = arith.constant 0.000000e+00 : f32
    %47 = vector.broadcast %cst_23 : f32 to vector<32x256xf32>
    %48 = arith.maximumf %46, %47 : vector<32x256xf32>
    %c0_24 = arith.constant 0 : index
    %c0_25 = arith.constant 0 : index
    %49 = vector.load %arg8[%c0_24, %c0_25] : memref<32x1xf32, #tpu.memory_space<vmem>>, vector<32x1xf32>
    %50 = vector.broadcast %49 : vector<32x1xf32> to vector<32x256xf32>
    %51 = arith.mulf %50, %48 : vector<32x256xf32>
    %cst_26 = arith.constant dense<0.000000e+00> : vector<256xf32>
    %52 = vector.multi_reduction <add>, %51, %cst_26 [0] : vector<32x256xf32> to vector<256xf32>
    %53 = vector.shape_cast %52 : vector<256xf32> to vector<1x256xf32>
    %c0_27 = arith.constant 0 : index
    %c0_28 = arith.constant 0 : index
    %54 = vector.load %arg9[%c0_27, %c0_28] : memref<1x1xf32, #tpu.memory_space<vmem>>, vector<1x1xf32>
    %55 = vector.broadcast %54 : vector<1x1xf32> to vector<1x256xf32>
    %56 = arith.addf %53, %55 : vector<1x256xf32>
    %57 = arith.negf %56 : vector<1x256xf32>
    %58 = math.exp %57 : vector<1x256xf32>
    %cst_29 = arith.constant 1.000000e+00 : f32
    %59 = vector.broadcast %cst_29 : f32 to vector<1x256xf32>
    %60 = arith.addf %59, %58 : vector<1x256xf32>
    %61 = arith.divf %59, %60 : vector<1x256xf32>
    %c0_30 = arith.constant 0 : index
    %c0_31 = arith.constant 0 : index
    %62 = vector.load %arg10[%c0_30, %c0_31] : memref<1x256xf32, #tpu.memory_space<vmem>>, vector<1x256xf32>
    tpu.vector_store %arg10[%c0_30, %c0_31], %61 {strides = array<i32>} : memref<1x256xf32, #tpu.memory_space<vmem>>, vector<1x256xf32>,
    return
  }
  func.func @transform_0(%arg0: i32) -> (i32, i32) {
    %c0_i32 = arith.constant 0 : i32
    %c0_i32_0 = arith.constant 0 : i32
    return %c0_i32, %arg0 : i32, i32
  }
  func.func @transform_1(%arg0: i32) -> (i32, i32) {
    %c0_i32 = arith.constant 0 : i32
    %c0_i32_0 = arith.constant 0 : i32
    %c0_i32_1 = arith.constant 0 : i32
    return %c0_i32, %c0_i32_0 : i32, i32
  }
  func.func @transform_2(%arg0: i32) -> (i32, i32) {
    %c0_i32 = arith.constant 0 : i32
    %c0_i32_0 = arith.constant 0 : i32
    %c0_i32_1 = arith.constant 0 : i32
    return %c0_i32, %c0_i32_0 : i32, i32
  }
  func.func @transform_3(%arg0: i32) -> (i32, i32) {
    %c0_i32 = arith.constant 0 : i32
    %c0_i32_0 = arith.constant 0 : i32
    %c0_i32_1 = arith.constant 0 : i32
    return %c0_i32, %c0_i32_0 : i32, i32
  }
  func.func @transform_4(%arg0: i32) -> (i32, i32) {
    %c0_i32 = arith.constant 0 : i32
    %c0_i32_0 = arith.constant 0 : i32
    %c0_i32_1 = arith.constant 0 : i32
    return %c0_i32, %c0_i32_0 : i32, i32
  }
  func.func @transform_5(%arg0: i32) -> (i32, i32) {
    %c0_i32 = arith.constant 0 : i32
    %c0_i32_0 = arith.constant 0 : i32
    %c0_i32_1 = arith.constant 0 : i32
    return %c0_i32, %c0_i32_0 : i32, i32
  }
  func.func @transform_6(%arg0: i32) -> (i32, i32) {
    %c0_i32 = arith.constant 0 : i32
    %c0_i32_0 = arith.constant 0 : i32
    %c0_i32_1 = arith.constant 0 : i32
    return %c0_i32, %c0_i32_0 : i32, i32
  }
  func.func @transform_7(%arg0: i32) -> (i32, i32) {
    %c0_i32 = arith.constant 0 : i32
    %c0_i32_0 = arith.constant 0 : i32
    %c0_i32_1 = arith.constant 0 : i32
    return %c0_i32, %c0_i32_0 : i32, i32
  }
  func.func @transform_8(%arg0: i32) -> (i32, i32) {
    %c0_i32 = arith.constant 0 : i32
    %c0_i32_0 = arith.constant 0 : i32
    %c0_i32_1 = arith.constant 0 : i32
    return %c0_i32, %c0_i32_0 : i32, i32
  }
  func.func @transform_9(%arg0: i32) -> (i32, i32) {
    %c0_i32 = arith.constant 0 : i32
    %c0_i32_0 = arith.constant 0 : i32
    return %c0_i32, %arg0 : i32, i32
  }
}

</mosaic_0001>

<llo_original>
// kernel: tpu_custom_call.1
$region0: #{tpu_custom_call.1}
  #allocation0 [shape = 'u32[]', space=smem, size = 0x4, offset = 0x4, fixed_abs, tag = 'smem constant byte address 0x4 - core index']
  #allocation1 [shape = 'u32[72,128]{1,0:T(1,128)}', space=vmem, size = 0x9000, scoped, tag = 'internal scratch']
  #allocation2 [shape = 'bf16[128,256]{1,0:T(8,128)(2,1)}', space=vmem, size = 0x10000, scoped, tag = 'scratch operand']
  #allocation3 [shape = 'f32[1,1]{1,0:T(1,128)S(1)}', space=vmem, size = 0x200, scoped, tag = 'scoped memory for tpu_custom_call.1']
  %s0 = inlined_call_operand.vmem [shape: s32[3,256], index: 0, kind: input, shape index: {}]
  %s1 = inlined_call_operand.vmem [shape: bf16[128,128], index: 1, kind: input, shape index: {}]
  %s2 = inlined_call_operand.vmem [shape: f32[128,1], index: 2, kind: input, shape index: {}]
  %s3 = inlined_call_operand.vmem [shape: bf16[64,128], index: 3, kind: input, shape index: {}]
  %s4 = inlined_call_operand.vmem [shape: f32[64,1], index: 4, kind: input, shape index: {}]
  %s5 = inlined_call_operand.vmem [shape: bf16[32,64], index: 5, kind: input, shape index: {}]
  %s6 = inlined_call_operand.vmem [shape: f32[32,1], index: 6, kind: input, shape index: {}]
  %s7 = inlined_call_operand.vmem [shape: f32[32,1], index: 7, kind: input, shape index: {}]
  %s8 = inlined_call_operand.<no memory space> [shape: f32[1,1], index: 8, kind: input, shape index: {}]
  %s9 = inlined_call_operand.hbm [shape: f32[1,256], index: 9, kind: output, shape index: {}]
  %s10 = sld [smem:[#allocation0]]
  $region46: #{tpu_custom_call.1} parent=0
    _
  %s12 = ssub.s32 1, %s10
  %s13 = scalar_select 0, %s12, %s10
  %v14 = vstv %s8
  %15 = vst [vmem:[#allocation3] sm:$0x1] %v14
  $region1: #{tpu_custom_call.1} parent=0
    #allocation4 [shape = 'u8[1024]{0}', space=vmem, size = 0x400, scoped, tag = 'output window, operand 0, single buffered']
    #allocation5 [shape = 's32[1]{0}', space=sflag, size = 0x4, scoped, tag = 'scoped memory for tpu_custom_call.1']
    %16 = vsyncpa [#allocation5], 0
    // Predicated region
    $region2: #{tpu_custom_call.1} parent=1 // pred_check
      _
    $region3: #{tpu_custom_call.1} parent=1 // pred_check_branch
      %18 = sbr.rel (0) target = $region5
    $region4: #{tpu_custom_call.1} parent=1 // pred_region
      _
    $region5: #{tpu_custom_call.1} parent=1 // pred_fallthru
      _
    // Predicated region
    $region6: #{tpu_custom_call.1} parent=1 // pred_check
      _
    $region7: #{tpu_custom_call.1} parent=1 // pred_check_branch
      %20 = sbr.rel (0) target = $region9
    $region8: #{tpu_custom_call.1} parent=1 // pred_region
      _
    $region9: #{tpu_custom_call.1} parent=1 // pred_fallthru
      _
    // Predicated region
    $region10: #{tpu_custom_call.1} parent=1 // pred_check
      _
    $region11: #{tpu_custom_call.1} parent=1 // pred_check_branch
      %22 = sbr.rel (0) target = $region13
    $region12: #{tpu_custom_call.1} parent=1 // pred_region
      _
    $region13: #{tpu_custom_call.1} parent=1 // pred_fallthru
      _
    // Predicated region
    $region14: #{tpu_custom_call.1} parent=1 // pred_check
      _
    $region15: #{tpu_custom_call.1} parent=1 // pred_check_branch
      %24 = sbr.rel (0) target = $region17
    $region16: #{tpu_custom_call.1} parent=1 // pred_region
      _
    $region17: #{tpu_custom_call.1} parent=1 // pred_fallthru
      _
    // Predicated region
    $region18: #{tpu_custom_call.1} parent=1 // pred_check
      _
    $region19: #{tpu_custom_call.1} parent=1 // pred_check_branch
      %26 = sbr.rel (0) target = $region21
    $region20: #{tpu_custom_call.1} parent=1 // pred_region
      _
    $region21: #{tpu_custom_call.1} parent=1 // pred_fallthru
      _
    // Predicated region
    $region22: #{tpu_custom_call.1} parent=1 // pred_check
      _
    $region23: #{tpu_custom_call.1} parent=1 // pred_check_branch
      %28 = sbr.rel (0) target = $region25
    $region24: #{tpu_custom_call.1} parent=1 // pred_region
      _
    $region25: #{tpu_custom_call.1} parent=1 // pred_fallthru
      _
    // Predicated region
    $region26: #{tpu_custom_call.1} parent=1 // pred_check
      _
    $region27: #{tpu_custom_call.1} parent=1 // pred_check_branch
      %30 = sbr.rel (0) target = $region29
    $region28: #{tpu_custom_call.1} parent=1 // pred_region
      _
    $region29: #{tpu_custom_call.1} parent=1 // pred_fallthru
      _
    // Predicated region
    $region30: #{tpu_custom_call.1} parent=1 // pred_check
      _
    $region31: #{tpu_custom_call.1} parent=1 // pred_check_branch
      %32 = sbr.rel (0) target = $region33
    $region32: #{tpu_custom_call.1} parent=1 // pred_region
      _
    $region33: #{tpu_custom_call.1} parent=1 // pred_fallthru
      _
    // Predicated region
    $region34: #{tpu_custom_call.1} parent=1 // pred_check
      _
    $region35: #{tpu_custom_call.1} parent=1 // pred_check_branch
      %34 = sbr.rel (0) target = $region37
    $region36: #{tpu_custom_call.1} parent=1 // pred_region
      _
    $region37: #{tpu_custom_call.1} parent=1 // pred_fallthru
      _
    %v36 = vld [vmem:[%s0] sm:$0x77]
    %v37 = vlaneseq
    %v38 = vshrl.u32 %v37, 7
    %v39 = vadd.s32 %v38, 8
    %v40 = vperm.slane %v36, 0
    %v41 = vperm.slane %v36, 4
    %v42 = vperm.slane %v40, 0
    %v43 = vperm.slane %v41, 0
    %vm44 = vcmp.eq.s32.totalorder %v38, %v42
    %vm45 = vcmp.eq.s32.totalorder %v38, %v43
    %vm46 = vcmp.eq.s32.totalorder %v39, %v42
    %vm47 = vcmp.eq.s32.totalorder %v39, %v43
    %v48 = vsel %vm44, 1, 0
    %v49 = vsel %vm45, 1, 0
    %v50 = vsel %vm46, 1, 0
    %v51 = vsel %vm47, 1, 0
    %v52 = vcvt.s32.f32 %v48
    %v53 = vcvt.s32.f32 %v49
    %v54 = vcvt.s32.f32 %v50
    %v55 = vcvt.s32.f32 %v51
    %v56 = vpack.c.bf16 %v53, %v52
    %v57 = vpack.c.bf16 %v55, %v54
    %58 = vst [vmem:[#allocation2] sm:$0xff] %v56
    %59 = vst [vmem:[#allocation2 + $0x8] sm:$0xff] %v57
    %v60 = vperm.slane %v36, 1
    %v61 = vperm.slane %v36, 5
    %v62 = vperm.slane %v60, 1
    %v63 = vperm.slane %v61, 1
    %vm64 = vcmp.eq.s32.totalorder %v38, %v62
    %vm65 = vcmp.eq.s32.totalorder %v38, %v63
    %vm66 = vcmp.eq.s32.totalorder %v39, %v62
    %vm67 = vcmp.eq.s32.totalorder %v39, %v63
    %v68 = vsel %vm64, 1, 0
    %v69 = vsel %vm65, 1, 0
    %v70 = vsel %vm66, 1, 0
    %v71 = vsel %vm67, 1, 0
    %v72 = vcvt.s32.f32 %v68
    %v73 = vcvt.s32.f32 %v69
    %v74 = vcvt.s32.f32 %v70
    %v75 = vcvt.s32.f32 %v71
    %v76 = vpack.c.bf16 %v73, %v72
    %v77 = vpack.c.bf16 %v75, %v74
    %78 = vst [vmem:[#allocation2 + $0x10] sm:$0xff] %v76
    %79 = vst [vmem:[#allocation2 + $0x18] sm:$0xff] %v77
    %v80 = vadd.s32 %v38, 16
    %v81 = vadd.s32 %v38, 24
    %v82 = vadd.s32 %v38, 32
    %v83 = vadd.s32 %v38, 40
    %v84 = vadd.s32 %v38, 48
    %v85 = vadd.s32 %v38, 56
    %v86 = vadd.s32 %v38, 64
    %v87 = vadd.s32 %v38, 72
    %v88 = vadd.s32 %v38, 80
    %v89 = vadd.s32 %v38, 88
    %v90 = vperm.slane %v36, 2
    %v91 = vperm.slane %v36, 6
    %v92 = vperm.slane %v90, 2
    %v93 = vperm.slane %v91, 2
    %vm94 = vcmp.eq.s32.totalorder %v38, %v92
    %vm95 = vcmp.eq.s32.totalorder %v38, %v93
    %vm96 = vcmp.eq.s32.totalorder %v39, %v92
    %vm97 = vcmp.eq.s32.totalorder %v39, %v93
    %vm98 = vcmp.eq.s32.totalorder %v80, %v92
    %vm99 = vcmp.eq.s32.totalorder %v80, %v93
    %vm100 = vcmp.eq.s32.totalorder %v81, %v92
    %vm101 = vcmp.eq.s32.totalorder %v81, %v93
    %vm102 = vcmp.eq.s32.totalorder %v82, %v92
    %vm103 = vcmp.eq.s32.totalorder %v82, %v93
    %vm104 = vcmp.eq.s32.totalorder %v83, %v92
    %vm105 = vcmp.eq.s32.totalorder %v83, %v93
    %vm106 = vcmp.eq.s32.totalorder %v84, %v92
    %vm107 = vcmp.eq.s32.totalorder %v84, %v93
    %vm108 = vcmp.eq.s32.totalorder %v85, %v92
    %vm109 = vcmp.eq.s32.totalorder %v85, %v93
    %vm110 = vcmp.eq.s32.totalorder %v86, %v92
    %vm111 = vcmp.eq.s32.totalorder %v86, %v93
    %vm112 = vcmp.eq.s32.totalorder %v87, %v92
    %vm113 = vcmp.eq.s32.totalorder %v87, %v93
    %vm114 = vcmp.eq.s32.totalorder %v88, %v92
    %vm115 = vcmp.eq.s32.totalorder %v88, %v93
    %vm116 = vcmp.eq.s32.totalorder %v89, %v92
    %vm117 = vcmp.eq.s32.totalorder %v89, %v93
    %v118 = vsel %vm94, 1, 0
    %v119 = vsel %vm95, 1, 0
    %v120 = vsel %vm96, 1, 0
    %v121 = vsel %vm97, 1, 0
    %v122 = vsel %vm98, 1, 0
    %v123 = vsel %vm99, 1, 0
    %v124 = vsel %vm100, 1, 0
    %v125 = vsel %vm101, 1, 0
    %v126 = vsel %vm102, 1, 0
    %v127 = vsel %vm103, 1, 0
    %v128 = vsel %vm104, 1, 0
    %v129 = vsel %vm105, 1, 0
    %v130 = vsel %vm106, 1, 0
    %v131 = vsel %vm107, 1, 0
    %v132 = vsel %vm108, 1, 0
    %v133 = vsel %vm109, 1, 0
    %v134 = vsel %vm110, 1, 0
    %v135 = vsel %vm111, 1, 0
    %v136 = vsel %vm112, 1, 0
    %v137 = vsel %vm113, 1, 0
    %v138 = vsel %vm114, 1, 0
    %v139 = vsel %vm115, 1, 0
    %v140 = vsel %vm116, 1, 0
    %v141 = vsel %vm117, 1, 0
    %v142 = vcvt.s32.f32 %v118
    %v143 = vcvt.s32.f32 %v119
    %v144 = vcvt.s32.f32 %v120
    %v145 = vcvt.s32.f32 %v121
    %v146 = vcvt.s32.f32 %v122
    %v147 = vcvt.s32.f32 %v123
    %v148 = vcvt.s32.f32 %v124
    %v149 = vcvt.s32.f32 %v125
    %v150 = vcvt.s32.f32 %v126
    %v151 = vcvt.s32.f32 %v127
    %v152 = vcvt.s32.f32 %v128
    %v153 = vcvt.s32.f32 %v129
    %v154 = vcvt.s32.f32 %v130
    %v155 = vcvt.s32.f32 %v131
    %v156 = vcvt.s32.f32 %v132
    %v157 = vcvt.s32.f32 %v133
    %v158 = vcvt.s32.f32 %v134
    %v159 = vcvt.s32.f32 %v135
    %v160 = vcvt.s32.f32 %v136
    %v161 = vcvt.s32.f32 %v137
    %v162 = vcvt.s32.f32 %v138
    %v163 = vcvt.s32.f32 %v139
    %v164 = vcvt.s32.f32 %v140
    %v165 = vcvt.s32.f32 %v141
    %v166 = vpack.c.bf16 %v143, %v142
    %v167 = vpack.c.bf16 %v145, %v144
    %v168 = vpack.c.bf16 %v147, %v146
    %v169 = vpack.c.bf16 %v149, %v148
    %v170 = vpack.c.bf16 %v151, %v150
    %v171 = vpack.c.bf16 %v153, %v152
    %v172 = vpack.c.bf16 %v155, %v154
    %v173 = vpack.c.bf16 %v157, %v156
    %v174 = vpack.c.bf16 %v159, %v158
    %v175 = vpack.c.bf16 %v161, %v160
    %v176 = vpack.c.bf16 %v163, %v162
    %v177 = vpack.c.bf16 %v165, %v164
    %178 = vst [vmem:[#allocation2 + $0x20] sm:$0xff] %v166
    %179 = vst [vmem:[#allocation2 + $0x28] sm:$0xff] %v167
    %180 = vst [vmem:[#allocation2 + $0x30] sm:$0xff] %v168
    %181 = vst [vmem:[#allocation2 + $0x38] sm:$0xff] %v169
    %182 = vst [vmem:[#allocation2 + $0x40] sm:$0xff] %v170
    %183 = vst [vmem:[#allocation2 + $0x48] sm:$0xff] %v171
    %184 = vst [vmem:[#allocation2 + $0x50] sm:$0xff] %v172
    %185 = vst [vmem:[#allocation2 + $0x58] sm:$0xff] %v173
    %186 = vst [vmem:[#allocation2 + $0x60] sm:$0xff] %v174
    %187 = vst [vmem:[#allocation2 + $0x68] sm:$0xff] %v175
    %188 = vst [vmem:[#allocation2 + $0x70] sm:$0xff] %v176
    %189 = vst [vmem:[#allocation2 + $0x78] sm:$0xff] %v177
    %v190 = vld [vmem:[%s1] sm:$0xf]
    %v191 = vld [vmem:[%s1 + $0x4] sm:$0xf]
    %v192 = vld [vmem:[%s1 + $0x8] sm:$0xf]
    %v193 = vld [vmem:[%s1 + $0xc] sm:$0xf]
    %v194 = vld [vmem:[%s1 + $0x10] sm:$0xf]
    %v195 = vld [vmem:[%s1 + $0x14] sm:$0xf]
    %v196 = vld [vmem:[%s1 + $0x18] sm:$0xf]
    %v197 = vld [vmem:[%s1 + $0x1c] sm:$0xf]
    %v198 = vld [vmem:[%s1 + $0x20] sm:$0xf]
    %v199 = vld [vmem:[%s1 + $0x24] sm:$0xf]
    %v200 = vld [vmem:[%s1 + $0x28] sm:$0xf]
    %v201 = vld [vmem:[%s1 + $0x2c] sm:$0xf]
    %v202 = vld [vmem:[%s1 + $0x30] sm:$0xf]
    %v203 = vld [vmem:[%s1 + $0x34] sm:$0xf]
    %v204 = vld [vmem:[%s1 + $0x38] sm:$0xf]
    %v205 = vld [vmem:[%s1 + $0x3c] sm:$0xf]
    %v206 = vld [vmem:[#allocation2] sm:$0xff]
    %v207 = vld [vmem:[#allocation2 + $0x8] sm:$0xff]
    %v208 = vld [vmem:[#allocation2 + $0x10] sm:$0xff]
    %v209 = vld [vmem:[#allocation2 + $0x18] sm:$0xff]
    %v210 = vld [vmem:[#allocation2 + $0x20] sm:$0xff]
    %v211 = vld [vmem:[#allocation2 + $0x28] sm:$0xff]
    %v212 = vld [vmem:[#allocation2 + $0x30] sm:$0xff]
    %v213 = vld [vmem:[#allocation2 + $0x38] sm:$0xff]
    %v214 = vld [vmem:[#allocation2 + $0x40] sm:$0xff]
    %v215 = vld [vmem:[#allocation2 + $0x48] sm:$0xff]
    %v216 = vld [vmem:[#allocation2 + $0x50] sm:$0xff]
    %v217 = vld [vmem:[#allocation2 + $0x58] sm:$0xff]
    %v218 = vld [vmem:[#allocation2 + $0x60] sm:$0xff]
    %v219 = vld [vmem:[#allocation2 + $0x68] sm:$0xff]
    %v220 = vld [vmem:[#allocation2 + $0x70] sm:$0xff]
    %v221 = vld [vmem:[#allocation2 + $0x78] sm:$0xff]
    %v222 = vld [vmem:[%s2] sm:$0xff]
    %v223 = vld [vmem:[%s2 + $0x8] sm:$0xff]
    %v224 = vld [vmem:[%s2 + $0x10] sm:$0xff]
    %v225 = vld [vmem:[%s2 + $0x18] sm:$0xff]
    %v226 = vld [vmem:[%s2 + $0x20] sm:$0xff]
    %v227 = vld [vmem:[%s2 + $0x28] sm:$0xff]
    %v228 = vld [vmem:[%s2 + $0x30] sm:$0xff]
    %v229 = vld [vmem:[%s2 + $0x38] sm:$0xff]
    %v230 = vld [vmem:[%s2 + $0x40] sm:$0xff]
    %v231 = vld [vmem:[%s2 + $0x48] sm:$0xff]
    %v232 = vld [vmem:[%s2 + $0x50] sm:$0xff]
    %v233 = vld [vmem:[%s2 + $0x58] sm:$0xff]
    %v234 = vld [vmem:[%s2 + $0x60] sm:$0xff]
    %v235 = vld [vmem:[%s2 + $0x68] sm:$0xff]
    %v236 = vld [vmem:[%s2 + $0x70] sm:$0xff]
    %v237 = vld [vmem:[%s2 + $0x78] sm:$0xff]
    %239 = vset.pattern.permute.xlu0 0
    %240 = vperm.xlu0 %239, %v222
    %v241 = vpop.permute.xlu0 %240
    %244 = vset.pattern.permute.xlu0 0
    %245 = vperm.xlu0 %244, %v223
    %v246 = vpop.permute.xlu0 %245
    %249 = vset.pattern.permute.xlu0 0
    %250 = vperm.xlu0 %249, %v224
    %v251 = vpop.permute.xlu0 %250
    %254 = vset.pattern.permute.xlu0 0
    %255 = vperm.xlu0 %254, %v225
    %v256 = vpop.permute.xlu0 %255
    %259 = vset.pattern.permute.xlu0 0
    %260 = vperm.xlu0 %259, %v226
    %v261 = vpop.permute.xlu0 %260
    %264 = vset.pattern.permute.xlu0 0
    %265 = vperm.xlu0 %264, %v227
    %v266 = vpop.permute.xlu0 %265
    %269 = vset.pattern.permute.xlu0 0
    %270 = vperm.xlu0 %269, %v228
    %v271 = vpop.permute.xlu0 %270
    %274 = vset.pattern.permute.xlu0 0
    %275 = vperm.xlu0 %274, %v229
    %v276 = vpop.permute.xlu0 %275
    %279 = vset.pattern.permute.xlu0 0
    %280 = vperm.xlu0 %279, %v230
    %v281 = vpop.permute.xlu0 %280
    %284 = vset.pattern.permute.xlu0 0
    %285 = vperm.xlu0 %284, %v231
    %v286 = vpop.permute.xlu0 %285
    %289 = vset.pattern.permute.xlu0 0
    %290 = vperm.xlu0 %289, %v232
    %v291 = vpop.permute.xlu0 %290
    %294 = vset.pattern.permute.xlu0 0
    %295 = vperm.xlu0 %294, %v233
    %v296 = vpop.permute.xlu0 %295
    %299 = vset.pattern.permute.xlu0 0
    %300 = vperm.xlu0 %299, %v234
    %v301 = vpop.permute.xlu0 %300
    %304 = vset.pattern.permute.xlu0 0
    %305 = vperm.xlu0 %304, %v235
    %v306 = vpop.permute.xlu0 %305
    %309 = vset.pattern.permute.xlu0 0
    %310 = vperm.xlu0 %309, %v236
    %v311 = vpop.permute.xlu0 %310
    %314 = vset.pattern.permute.xlu0 0
    %315 = vperm.xlu0 %314, %v237
    %v316 = vpop.permute.xlu0 %315
    %v334 = vunpack.c.l.b16 %v190
    %v335 = vunpack.c.l.b16 %v191
    %v336 = vunpack.c.l.b16 %v192
    %v337 = vunpack.c.l.b16 %v193
    %v338 = vunpack.c.l.b16 %v194
    %v339 = vunpack.c.l.b16 %v195
    %v340 = vunpack.c.l.b16 %v196
    %v341 = vunpack.c.l.b16 %v197
    %v342 = vunpack.c.l.b16 %v198
    %v343 = vunpack.c.l.b16 %v199
    %v344 = vunpack.c.l.b16 %v200
    %v345 = vunpack.c.l.b16 %v201
    %v346 = vunpack.c.l.b16 %v202
    %v347 = vunpack.c.l.b16 %v203
    %v348 = vunpack.c.l.b16 %v204
    %v349 = vunpack.c.l.b16 %v205
    %v350 = vpack.c.b16 %v335, %v334
    %v351 = vpack.c.b16 %v337, %v336
    %v352 = vpack.c.b16 %v339, %v338
    %v353 = vpack.c.b16 %v341, %v340
    %v354 = vpack.c.b16 %v343, %v342
    %v355 = vpack.c.b16 %v345, %v344
    %v356 = vpack.c.b16 %v347, %v346
    %v357 = vpack.c.b16 %v349, %v348
    %v382 = vunpack.c.l.b16 %v206
    %v383 = vunpack.c.h.b16 %v206
    %v384 = vunpack.c.l.b16 %v207
    %v385 = vunpack.c.h.b16 %v207
    %v386 = vunpack.c.l.b16 %v208
    %v387 = vunpack.c.h.b16 %v208
    %v388 = vunpack.c.l.b16 %v209
    %v389 = vunpack.c.h.b16 %v209
    %v390 = vunpack.c.l.b16 %v210
    %v391 = vunpack.c.h.b16 %v210
    %v392 = vunpack.c.l.b16 %v211
    %v393 = vunpack.c.h.b16 %v211
    %v394 = vunpack.c.l.b16 %v212
    %v395 = vunpack.c.h.b16 %v212
    %v396 = vunpack.c.l.b16 %v213
    %v397 = vunpack.c.h.b16 %v213
    %v398 = vunpack.c.l.b16 %v214
    %v399 = vunpack.c.h.b16 %v214
    %v400 = vunpack.c.l.b16 %v215
    %v401 = vunpack.c.h.b16 %v215
    %v402 = vunpack.c.l.b16 %v216
    %v403 = vunpack.c.h.b16 %v216
    %v404 = vunpack.c.l.b16 %v217
    %v405 = vunpack.c.h.b16 %v217
    %v406 = vunpack.c.l.b16 %v218
    %v407 = vunpack.c.h.b16 %v218
    %v408 = vunpack.c.l.b16 %v219
    %v409 = vunpack.c.h.b16 %v219
    %v410 = vunpack.c.l.b16 %v220
    %v411 = vunpack.c.h.b16 %v220
    %v412 = vunpack.c.l.b16 %v221
    %v413 = vunpack.c.h.b16 %v221
    %v414 = vpack.c.b16 %v384, %v382
    %v415 = vpack.c.b16 %v385, %v383
    %v416 = vpack.c.b16 %v388, %v386
    %v417 = vpack.c.b16 %v389, %v387
    %v418 = vpack.c.b16 %v392, %v390
    %v419 = vpack.c.b16 %v393, %v391
    %v420 = vpack.c.b16 %v396, %v394
    %v421 = vpack.c.b16 %v397, %v395
    %v422 = vpack.c.b16 %v400, %v398
    %v423 = vpack.c.b16 %v401, %v399
    %v424 = vpack.c.b16 %v404, %v402
    %v425 = vpack.c.b16 %v405, %v403
    %v426 = vpack.c.b16 %v408, %v406
    %v427 = vpack.c.b16 %v409, %v407
    %v428 = vpack.c.b16 %v412, %v410
    %v429 = vpack.c.b16 %v413, %v411
    %446 = vmatpush.bf16.msra.mxu0 %v428
    %447 = vmatpush.bf16.msra.mxu0 %v426
    %448 = vmatpush.bf16.msra.mxu0 %v424
    %449 = vmatpush.bf16.msra.mxu0 %v422
    %450 = vmatpush.bf16.msra.mxu0 %v420
    %451 = vmatpush.bf16.msra.mxu0 %v418
    %452 = vmatpush.bf16.msra.mxu0 %v416
    %453 = vmatpush.bf16.msra.mxu0 %v414
    %454 = vmatmul.bf16.gmra.mxu0 %v350
    %v455 = vpop.f32.mrf.mxu0
    %v456 = vadd.f32 %v241, %v455
    %v457 = vpop.f32.mrf.mxu0
    %v458 = vadd.f32 %v246, %v457
    %459 = vmatmul.bf16.gmra.mxu0 %v351
    %v460 = vpop.f32.mrf.mxu0
    %v461 = vadd.f32 %v251, %v460
    %v462 = vpop.f32.mrf.mxu0
    %v463 = vadd.f32 %v256, %v462
    %464 = vmatmul.bf16.gmra.mxu0 %v352
    %v465 = vpop.f32.mrf.mxu0
    %v466 = vadd.f32 %v261, %v465
    %v467 = vpop.f32.mrf.mxu0
    %v468 = vadd.f32 %v266, %v467
    %469 = vmatmul.bf16.gmra.mxu0 %v353
    %v470 = vpop.f32.mrf.mxu0
    %v471 = vadd.f32 %v271, %v470
    %v472 = vpop.f32.mrf.mxu0
    %v473 = vadd.f32 %v276, %v472
    %474 = vmatmul.bf16.gmra.mxu0 %v354
    %v475 = vpop.f32.mrf.mxu0
    %v476 = vadd.f32 %v281, %v475
    %v477 = vpop.f32.mrf.mxu0
    %v478 = vadd.f32 %v286, %v477
    %479 = vmatmul.bf16.gmra.mxu0 %v355
    %v480 = vpop.f32.mrf.mxu0
    %v481 = vadd.f32 %v291, %v480
    %v482 = vpop.f32.mrf.mxu0
    %v483 = vadd.f32 %v296, %v482
    %484 = vmatmul.bf16.gmra.mxu0 %v356
    %v485 = vpop.f32.mrf.mxu0
    %v486 = vadd.f32 %v301, %v485
    %v487 = vpop.f32.mrf.mxu0
    %v488 = vadd.f32 %v306, %v487
    %489 = vmatmul.bf16.gmra.mxu0 %v357
    %v490 = vpop.f32.mrf.mxu0
    %v491 = vadd.f32 %v311, %v490
    %v492 = vpop.f32.mrf.mxu0
    %v493 = vadd.f32 %v316, %v492
    %494 = vdwg.mxu0
    %495 = vmatpush.bf16.msra.mxu0 %v429
    %496 = vmatpush.bf16.msra.mxu0 %v427
    %497 = vmatpush.bf16.msra.mxu0 %v425
    %498 = vmatpush.bf16.msra.mxu0 %v423
    %499 = vmatpush.bf16.msra.mxu0 %v421
    %500 = vmatpush.bf16.msra.mxu0 %v419
    %501 = vmatpush.bf16.msra.mxu0 %v417
    %502 = vmatpush.bf16.msra.mxu0 %v415
    %503 = vmatmul.bf16.gmra.mxu0 %v350
    %v504 = vpop.f32.mrf.mxu0
    %v505 = vadd.f32 %v241, %v504
    %v506 = vpop.f32.mrf.mxu0
    %v507 = vadd.f32 %v246, %v506
    %508 = vmatmul.bf16.gmra.mxu0 %v351
    %v509 = vpop.f32.mrf.mxu0
    %v510 = vadd.f32 %v251, %v509
    %v511 = vpop.f32.mrf.mxu0
    %v512 = vadd.f32 %v256, %v511
    %513 = vmatmul.bf16.gmra.mxu0 %v352
    %v514 = vpop.f32.mrf.mxu0
    %v515 = vadd.f32 %v261, %v514
    %v516 = vpop.f32.mrf.mxu0
    %v517 = vadd.f32 %v266, %v516
    %518 = vmatmul.bf16.gmra.mxu0 %v353
    %v519 = vpop.f32.mrf.mxu0
    %v520 = vadd.f32 %v271, %v519
    %v521 = vpop.f32.mrf.mxu0
    %v522 = vadd.f32 %v276, %v521
    %523 = vmatmul.bf16.gmra.mxu0 %v354
    %v524 = vpop.f32.mrf.mxu0
    %v525 = vadd.f32 %v281, %v524
    %v526 = vpop.f32.mrf.mxu0
    %v527 = vadd.f32 %v286, %v526
    %528 = vmatmul.bf16.gmra.mxu0 %v355
    %v529 = vpop.f32.mrf.mxu0
    %v530 = vadd.f32 %v291, %v529
    %v531 = vpop.f32.mrf.mxu0
    %v532 = vadd.f32 %v296, %v531
    %533 = vmatmul.bf16.gmra.mxu0 %v356
    %v534 = vpop.f32.mrf.mxu0
    %v535 = vadd.f32 %v301, %v534
    %v536 = vpop.f32.mrf.mxu0
    %v537 = vadd.f32 %v306, %v536
    %538 = vmatmul.bf16.gmra.mxu0 %v357
    %v539 = vpop.f32.mrf.mxu0
    %v540 = vadd.f32 %v311, %v539
    %v541 = vpop.f32.mrf.mxu0
    %v542 = vadd.f32 %v316, %v541
    %543 = vdwg.mxu0
    %v544 = vmax.f32 %v456, 0.0
    %v545 = vmax.f32 %v505, 0.0
    %v546 = vmax.f32 %v458, 0.0
    %v547 = vmax.f32 %v507, 0.0
    %v548 = vmax.f32 %v461, 0.0
    %v549 = vmax.f32 %v510, 0.0
    %v550 = vmax.f32 %v463, 0.0
    %v551 = vmax.f32 %v512, 0.0
    %v552 = vmax.f32 %v466, 0.0
    %v553 = vmax.f32 %v515, 0.0
    %v554 = vmax.f32 %v468, 0.0
    %v555 = vmax.f32 %v517, 0.0
    %v556 = vmax.f32 %v471, 0.0
    %v557 = vmax.f32 %v520, 0.0
    %v558 = vmax.f32 %v473, 0.0
    %v559 = vmax.f32 %v522, 0.0
    %v560 = vmax.f32 %v476, 0.0
    %v561 = vmax.f32 %v525, 0.0
    %v562 = vmax.f32 %v478, 0.0
    %v563 = vmax.f32 %v527, 0.0
    %v564 = vmax.f32 %v481, 0.0
    %v565 = vmax.f32 %v530, 0.0
    %v566 = vmax.f32 %v483, 0.0
    %v567 = vmax.f32 %v532, 0.0
    %v568 = vmax.f32 %v486, 0.0
    %v569 = vmax.f32 %v535, 0.0
    %v570 = vmax.f32 %v488, 0.0
    %v571 = vmax.f32 %v537, 0.0
    %v572 = vmax.f32 %v491, 0.0
    %v573 = vmax.f32 %v540, 0.0
    %v574 = vmax.f32 %v493, 0.0
    %v575 = vmax.f32 %v542, 0.0
    %v576 = vld [vmem:[%s3] sm:$0xf]
    %v577 = vld [vmem:[%s3 + $0x4] sm:$0xf]
    %v578 = vld [vmem:[%s3 + $0x8] sm:$0xf]
    %v579 = vld [vmem:[%s3 + $0xc] sm:$0xf]
    %v580 = vld [vmem:[%s3 + $0x10] sm:$0xf]
    %v581 = vld [vmem:[%s3 + $0x14] sm:$0xf]
    %v582 = vld [vmem:[%s3 + $0x18] sm:$0xf]
    %v583 = vld [vmem:[%s3 + $0x1c] sm:$0xf]
    %v584 = vpack.c.bf16 %v546, %v544
    %v585 = vpack.c.bf16 %v547, %v545
    %v586 = vpack.c.bf16 %v550, %v548
    %v587 = vpack.c.bf16 %v551, %v549
    %v588 = vpack.c.bf16 %v554, %v552
    %v589 = vpack.c.bf16 %v555, %v553
    %v590 = vpack.c.bf16 %v558, %v556
    %v591 = vpack.c.bf16 %v559, %v557
    %v592 = vpack.c.bf16 %v562, %v560
    %v593 = vpack.c.bf16 %v563, %v561
    %v594 = vpack.c.bf16 %v566, %v564
    %v595 = vpack.c.bf16 %v567, %v565
    %v596 = vpack.c.bf16 %v570, %v568
    %v597 = vpack.c.bf16 %v571, %v569
    %v598 = vpack.c.bf16 %v574, %v572
    %v599 = vpack.c.bf16 %v575, %v573
    %v600 = vld [vmem:[%s4] sm:$0xff]
    %v601 = vld [vmem:[%s4 + $0x8] sm:$0xff]
    %v602 = vld [vmem:[%s4 + $0x10] sm:$0xff]
    %v603 = vld [vmem:[%s4 + $0x18] sm:$0xff]
    %v604 = vld [vmem:[%s4 + $0x20] sm:$0xff]
    %v605 = vld [vmem:[%s4 + $0x28] sm:$0xff]
    %v606 = vld [vmem:[%s4 + $0x30] sm:$0xff]
    %v607 = vld [vmem:[%s4 + $0x38] sm:$0xff]
    %609 = vset.pattern.permute.xlu0 0
    %610 = vperm.xlu0 %609, %v600
    %v611 = vpop.permute.xlu0 %610
    %614 = vset.pattern.permute.xlu0 0
    %615 = vperm.xlu0 %614, %v601
    %v616 = vpop.permute.xlu0 %615
    %619 = vset.pattern.permute.xlu0 0
    %620 = vperm.xlu0 %619, %v602
    %v621 = vpop.permute.xlu0 %620
    %624 = vset.pattern.permute.xlu0 0
    %625 = vperm.xlu0 %624, %v603
    %v626 = vpop.permute.xlu0 %625
    %629 = vset.pattern.permute.xlu0 0
    %630 = vperm.xlu0 %629, %v604
    %v631 = vpop.permute.xlu0 %630
    %634 = vset.pattern.permute.xlu0 0
    %635 = vperm.xlu0 %634, %v605
    %v636 = vpop.permute.xlu0 %635
    %639 = vset.pattern.permute.xlu0 0
    %640 = vperm.xlu0 %639, %v606
    %v641 = vpop.permute.xlu0 %640
    %644 = vset.pattern.permute.xlu0 0
    %645 = vperm.xlu0 %644, %v607
    %v646 = vpop.permute.xlu0 %645
    %v656 = vunpack.c.l.b16 %v576
    %v657 = vunpack.c.l.b16 %v577
    %v658 = vunpack.c.l.b16 %v578
    %v659 = vunpack.c.l.b16 %v579
    %v660 = vunpack.c.l.b16 %v580
    %v661 = vunpack.c.l.b16 %v581
    %v662 = vunpack.c.l.b16 %v582
    %v663 = vunpack.c.l.b16 %v583
    %v664 = vpack.c.b16 %v657, %v656
    %v665 = vpack.c.b16 %v659, %v658
    %v666 = vpack.c.b16 %v661, %v660
    %v667 = vpack.c.b16 %v663, %v662
    %672 = vmatpush.bf16.msra.mxu0 %v598
    %673 = vmatpush.bf16.msra.mxu0 %v596
    %674 = vmatpush.bf16.msra.mxu0 %v594
    %675 = vmatpush.bf16.msra.mxu0 %v592
    %676 = vmatpush.bf16.msra.mxu0 %v590
    %677 = vmatpush.bf16.msra.mxu0 %v588
    %678 = vmatpush.bf16.msra.mxu0 %v586
    %679 = vmatpush.bf16.msra.mxu0 %v584
    %680 = vmatmul.bf16.gmra.mxu0 %v664
    %v681 = vpop.f32.mrf.mxu0
    %v682 = vadd.f32 %v611, %v681
    %v683 = vpop.f32.mrf.mxu0
    %v684 = vadd.f32 %v616, %v683
    %685 = vmatmul.bf16.gmra.mxu0 %v665
    %v686 = vpop.f32.mrf.mxu0
    %v687 = vadd.f32 %v621, %v686
    %v688 = vpop.f32.mrf.mxu0
    %v689 = vadd.f32 %v626, %v688
    %690 = vmatmul.bf16.gmra.mxu0 %v666
    %v691 = vpop.f32.mrf.mxu0
    %v692 = vadd.f32 %v631, %v691
    %v693 = vpop.f32.mrf.mxu0
    %v694 = vadd.f32 %v636, %v693
    %695 = vmatmul.bf16.gmra.mxu0 %v667
    %v696 = vpop.f32.mrf.mxu0
    %v697 = vadd.f32 %v641, %v696
    %v698 = vpop.f32.mrf.mxu0
    %v699 = vadd.f32 %v646, %v698
    %700 = vdwg.mxu0
    %701 = vmatpush.bf16.msra.mxu0 %v599
    %702 = vmatpush.bf16.msra.mxu0 %v597
    %703 = vmatpush.bf16.msra.mxu0 %v595
    %704 = vmatpush.bf16.msra.mxu0 %v593
    %705 = vmatpush.bf16.msra.mxu0 %v591
    %706 = vmatpush.bf16.msra.mxu0 %v589
    %707 = vmatpush.bf16.msra.mxu0 %v587
    %708 = vmatpush.bf16.msra.mxu0 %v585
    %709 = vmatmul.bf16.gmra.mxu0 %v664
    %v710 = vpop.f32.mrf.mxu0
    %v711 = vadd.f32 %v611, %v710
    %v712 = vpop.f32.mrf.mxu0
    %v713 = vadd.f32 %v616, %v712
    %714 = vmatmul.bf16.gmra.mxu0 %v665
    %v715 = vpop.f32.mrf.mxu0
    %v716 = vadd.f32 %v621, %v715
    %v717 = vpop.f32.mrf.mxu0
    %v718 = vadd.f32 %v626, %v717
    %719 = vmatmul.bf16.gmra.mxu0 %v666
    %v720 = vpop.f32.mrf.mxu0
    %v721 = vadd.f32 %v631, %v720
    %v722 = vpop.f32.mrf.mxu0
    %v723 = vadd.f32 %v636, %v722
    %724 = vmatmul.bf16.gmra.mxu0 %v667
    %v725 = vpop.f32.mrf.mxu0
    %v726 = vadd.f32 %v641, %v725
    %v727 = vpop.f32.mrf.mxu0
    %v728 = vadd.f32 %v646, %v727
    %729 = vdwg.mxu0
    %v730 = vmax.f32 %v682, 0.0
    %v731 = vmax.f32 %v711, 0.0
    %v732 = vmax.f32 %v684, 0.0
    %v733 = vmax.f32 %v713, 0.0
    %v734 = vmax.f32 %v687, 0.0
    %v735 = vmax.f32 %v716, 0.0
    %v736 = vmax.f32 %v689, 0.0
    %v737 = vmax.f32 %v718, 0.0
    %v738 = vmax.f32 %v692, 0.0
    %v739 = vmax.f32 %v721, 0.0
    %v740 = vmax.f32 %v694, 0.0
    %v741 = vmax.f32 %v723, 0.0
    %v742 = vmax.f32 %v697, 0.0
    %v743 = vmax.f32 %v726, 0.0
    %v744 = vmax.f32 %v699, 0.0
    %v745 = vmax.f32 %v728, 0.0
    %v746 = vld [vmem:[%s5] sm:$0xf]
    %v747 = vld [vmem:[%s5 + $0x4] sm:$0xf]
    %v748 = vld [vmem:[%s5 + $0x8] sm:$0xf]
    %v749 = vld [vmem:[%s5 + $0xc] sm:$0xf]
    %v750 = vpack.c.bf16 %v732, %v730
    %v751 = vpack.c.bf16 %v733, %v731
    %v752 = vpack.c.bf16 %v736, %v734
    %v753 = vpack.c.bf16 %v737, %v735
    %v754 = vpack.c.bf16 %v740, %v738
    %v755 = vpack.c.bf16 %v741, %v739
    %v756 = vpack.c.bf16 %v744, %v742
    %v757 = vpack.c.bf16 %v745, %v743
    %v758 = vld [vmem:[%s6] sm:$0xff]
    %v759 = vld [vmem:[%s6 + $0x8] sm:$0xff]
    %v760 = vld [vmem:[%s6 + $0x10] sm:$0xff]
    %v761 = vld [vmem:[%s6 + $0x18] sm:$0xff]
    %763 = vset.pattern.permute.xlu0 0
    %764 = vperm.xlu0 %763, %v758
    %v765 = vpop.permute.xlu0 %764
    %768 = vset.pattern.permute.xlu0 0
    %769 = vperm.xlu0 %768, %v759
    %v770 = vpop.permute.xlu0 %769
    %773 = vset.pattern.permute.xlu0 0
    %774 = vperm.xlu0 %773, %v760
    %v775 = vpop.permute.xlu0 %774
    %778 = vset.pattern.permute.xlu0 0
    %779 = vperm.xlu0 %778, %v761
    %v780 = vpop.permute.xlu0 %779
    %v786 = vunpack.c.l.b16 %v746
    %v787 = vunpack.c.l.b16 %v747
    %v788 = vunpack.c.l.b16 %v748
    %v789 = vunpack.c.l.b16 %v749
    %v790 = vpack.c.b16 %v787, %v786
    %v791 = vpack.c.b16 %v789, %v788
    %vm792 = vcmask 523264
    %v794 = vsel %vm792, %v790, 0
    %v797 = vsel %vm792, %v791, 0
    %799 = vmatpush.bf16.msra.mxu0 0
    %800 = vmatpush.bf16.msra.mxu0 0
    %801 = vmatpush.bf16.msra.mxu0 0
    %802 = vmatpush.bf16.msra.mxu0 0
    %803 = vmatpush.bf16.msra.mxu0 %v756
    %804 = vmatpush.bf16.msra.mxu0 %v754
    %805 = vmatpush.bf16.msra.mxu0 %v752
    %806 = vmatpush.bf16.msra.mxu0 %v750
    %807 = vmatmul.bf16.gmra.mxu0 %v794
    %v808 = vpop.f32.mrf.mxu0
    %v809 = vadd.f32 %v765, %v808
    %v810 = vpop.f32.mrf.mxu0
    %v811 = vadd.f32 %v770, %v810
    %812 = vmatmul.bf16.gmra.mxu0 %v797
    %v813 = vpop.f32.mrf.mxu0
    %v814 = vadd.f32 %v775, %v813
    %v815 = vpop.f32.mrf.mxu0
    %v816 = vadd.f32 %v780, %v815
    %817 = vdwg.mxu0
    %818 = vmatpush.bf16.msra.mxu0 0
    %819 = vmatpush.bf16.msra.mxu0 0
    %820 = vmatpush.bf16.msra.mxu0 0
    %821 = vmatpush.bf16.msra.mxu0 0
    %822 = vmatpush.bf16.msra.mxu0 %v757
    %823 = vmatpush.bf16.msra.mxu0 %v755
    %824 = vmatpush.bf16.msra.mxu0 %v753
    %825 = vmatpush.bf16.msra.mxu0 %v751
    %826 = vmatmul.bf16.gmra.mxu0 %v794
    %v827 = vpop.f32.mrf.mxu0
    %v828 = vadd.f32 %v765, %v827
    %v829 = vpop.f32.mrf.mxu0
    %v830 = vadd.f32 %v770, %v829
    %831 = vmatmul.bf16.gmra.mxu0 %v797
    %v832 = vpop.f32.mrf.mxu0
    %v833 = vadd.f32 %v775, %v832
    %v834 = vpop.f32.mrf.mxu0
    %v835 = vadd.f32 %v780, %v834
    %836 = vdwg.mxu0
    %v837 = vmax.f32 %v809, 0.0
    %v838 = vmax.f32 %v828, 0.0
    %v839 = vmax.f32 %v811, 0.0
    %v840 = vmax.f32 %v830, 0.0
    %v841 = vmax.f32 %v814, 0.0
    %v842 = vmax.f32 %v833, 0.0
    %v843 = vmax.f32 %v816, 0.0
    %v844 = vmax.f32 %v835, 0.0
    %v845 = vld [vmem:[%s7] sm:$0xff]
    %v846 = vld [vmem:[%s7 + $0x8] sm:$0xff]
    %v847 = vld [vmem:[%s7 + $0x10] sm:$0xff]
    %v848 = vld [vmem:[%s7 + $0x18] sm:$0xff]
    %850 = vset.pattern.permute.xlu0 0
    %851 = vperm.xlu0 %850, %v845
    %v852 = vpop.permute.xlu0 %851
    %855 = vset.pattern.permute.xlu0 0
    %856 = vperm.xlu0 %855, %v846
    %v857 = vpop.permute.xlu0 %856
    %860 = vset.pattern.permute.xlu0 0
    %861 = vperm.xlu0 %860, %v847
    %v862 = vpop.permute.xlu0 %861
    %865 = vset.pattern.permute.xlu0 0
    %866 = vperm.xlu0 %865, %v848
    %v867 = vpop.permute.xlu0 %866
    %v869 = vmul.f32 %v852, %v837
    %v870 = vmul.f32 %v852, %v838
    %v871 = vmul.f32 %v857, %v839
    %v872 = vmul.f32 %v857, %v840
    %v873 = vmul.f32 %v862, %v841
    %v874 = vmul.f32 %v862, %v842
    %v875 = vmul.f32 %v867, %v843
    %v876 = vmul.f32 %v867, %v844
    %v877 = vadd.f32 %v869, %v871
    %v878 = vadd.f32 %v877, %v873
    %v879 = vadd.f32 %v878, %v875
    %v880 = vrot.slane %v879, 4
    %v881 = vadd.f32 %v879, %v880
    %v882 = vrot.slane %v881, 2
    %v883 = vadd.f32 %v881, %v882
    %v884 = vrot.slane %v883, 1
    %v885 = vadd.f32 %v883, %v884
    %v886 = vadd.f32 %v870, %v872
    %v887 = vadd.f32 %v886, %v874
    %v888 = vadd.f32 %v887, %v876
    %v889 = vrot.slane %v888, 4
    %v890 = vadd.f32 %v888, %v889
    %v891 = vrot.slane %v890, 2
    %v892 = vadd.f32 %v890, %v891
    %v893 = vrot.slane %v892, 1
    %v894 = vadd.f32 %v892, %v893
    %v895 = vld [vmem:[#allocation3] sm:$0x1]
    %897 = vset.pattern.permute.xlu0 0
    %898 = vperm.xlu0 %897, %v895
    %v899 = vpop.permute.xlu0 %898
    %v901 = vperm.slane %v899, 0
    %v902 = vadd.f32 %v885, %v901
    %v903 = vadd.f32 %v894, %v901
    %v904 = vxor.u32 %v902, 2147483648
    %v905 = vxor.u32 %v903, 2147483648
    %v906 = vmul.f32 %v904, 1.442695
    %v907 = vpow.pop %v906
    %v908 = vmul.f32 %v905, 1.442695
    %v909 = vpow.pop %v908
    %v910 = vadd.f32 %v907, 1.0
    %v911 = vadd.f32 %v909, 1.0
    %v912 = vrcp.pop %v910
    %v913 = vmul.f32 %v910, %v912
    %v914 = vsub.f32 1.0, %v913
    %v915 = vmul.f32 %v912, %v914
    %v916 = vadd.f32 %v912, %v915
    %vm917 = vweird.f32 %v910
    %vm918 = vweird.f32 %v912
    %vm919 = vmor %vm917, %vm918
    %v920 = vsel %vm919, %v912, %v916
    %v921 = vand.u32 2147483647, %v910
    %vm922 = vcmp.eq.f32.partialorder %v921, 8.507059e+37
    %v923 = vand.u32 %v910, 2147483648
    %v924 = vor.u32 1.1754944e-38, %v923
    %v925 = vsel %vm922, %v924, %v920
    %v926 = vmul.f32 1.0, %v925
    %v927 = vrcp.pop %v911
    %v928 = vmul.f32 %v911, %v927
    %v929 = vsub.f32 1.0, %v928
    %v930 = vmul.f32 %v927, %v929
    %v931 = vadd.f32 %v927, %v930
    %vm932 = vweird.f32 %v911
    %vm933 = vweird.f32 %v927
    %vm934 = vmor %vm932, %vm933
    %v935 = vsel %vm934, %v927, %v931
    %v936 = vand.u32 2147483647, %v911
    %vm937 = vcmp.eq.f32.partialorder %v936, 8.507059e+37
    %v938 = vand.u32 %v911, 2147483648
    %v939 = vor.u32 1.1754944e-38, %v938
    %v940 = vsel %vm937, %v939, %v935
    %v941 = vmul.f32 1.0, %v940
    %v944 = vrot.slane %v941, 7
    %vm945 = vcmask 1040384
    %v946 = vsel %vm945, %v926, %v944
    %v948 = vlaneseq
    %vm949 = vcmp.ge.s32.totalorder %v948, 0
    %vm950 = vcmp.lt.s32.totalorder %v948, 256
    %vm951 = vmand %vm949, %vm950
    %952 = vst.msk [vmem:[#allocation4] sm:$0x3] %vm951, %v946
    // Predicated region
    $region38: #{tpu_custom_call.1} parent=1 // pred_check
      _
    $region39: #{tpu_custom_call.1} parent=1 // pred_check_branch
      %954 = sbr.rel (0) target = $region41
    $region40: #{tpu_custom_call.1} parent=1 // pred_region
      %956 = vsyncadd [#allocation5], 0
      %s958 = sshll.u32 [#allocation4], 4
      %s959 = int_to_ptr.vmem [resolvable:$true] %s958
      %s960 = sshll.u32 %s9, 4
      %s961 = int_to_ptr.hbm [resolvable:$true] %s960
      %963 = dma.vmem_to_hbm [thread:$0]  %s959, 32, %s961, [#allocation5]
    $region41: #{tpu_custom_call.1} parent=1 // pred_fallthru
      _
    // Predicated region
    $region42: #{tpu_custom_call.1} parent=1 // pred_check
      _
    $region43: #{tpu_custom_call.1} parent=1 // pred_check_branch
      %965 = sbr.rel (0) target = $region45
    $region44: #{tpu_custom_call.1} parent=1 // pred_region
      %967 = dma.done [#allocation5], 32
    $region45: #{tpu_custom_call.1} parent=1 // pred_fallthru
      _
    %968 = vsyncpa [#allocation5], 1

// kernel: tpu_custom_call.1
$region0: #{tpu_custom_call.1}
  #allocation0 [shape = 'u32[]', space=smem, size = 0x4, offset = 0x4, fixed_abs, tag = 'smem constant byte address 0x4 - core index']
  #allocation1 [shape = 'u32[72,128]{1,0:T(1,128)}', space=vmem, size = 0x9000, scoped, tag = 'internal scratch']
  #allocation2 [shape = 'bf16[128,256]{1,0:T(8,128)(2,1)}', space=vmem, size = 0x10000, scoped, tag = 'scratch operand']
  #allocation3 [shape = 'f32[1,1]{1,0:T(1,128)S(1)}', space=vmem, size = 0x200, scoped, tag = 'scoped memory for tpu_custom_call.1']
  %s0 = inlined_call_operand.vmem [shape: s32[3,256], index: 0, kind: input, shape index: {}]
  %s1 = inlined_call_operand.vmem [shape: bf16[128,128], index: 1, kind: input, shape index: {}]
  %s2 = inlined_call_operand.vmem [shape: f32[128,1], index: 2, kind: input, shape index: {}]
  %s3 = inlined_call_operand.vmem [shape: bf16[64,128], index: 3, kind: input, shape index: {}]
  %s4 = inlined_call_operand.vmem [shape: f32[64,1], index: 4, kind: input, shape index: {}]
  %s5 = inlined_call_operand.vmem [shape: bf16[32,64], index: 5, kind: input, shape index: {}]
  %s6 = inlined_call_operand.vmem [shape: f32[32,1], index: 6, kind: input, shape index: {}]
  %s7 = inlined_call_operand.vmem [shape: f32[32,1], index: 7, kind: input, shape index: {}]
  %s8 = inlined_call_operand.<no memory space> [shape: f32[1,1], index: 8, kind: input, shape index: {}]
  %s9 = inlined_call_operand.hbm [shape: f32[1,256], index: 9, kind: output, shape index: {}]
  %s10 = sld [smem:[#allocation0]]
  $region46: #{tpu_custom_call.1} parent=0
    _
  %s12 = ssub.s32 1, %s10
  %s13 = scalar_select 0, %s12, %s10
  %v14 = vstv %s8
  %15 = vst [vmem:[#allocation3] sm:$0x1] %v14
  $region1: #{tpu_custom_call.1} parent=0
    #allocation4 [shape = 'u8[1024]{0}', space=vmem, size = 0x400, scoped, tag = 'output window, operand 0, single buffered']
    #allocation5 [shape = 's32[1]{0}', space=sflag, size = 0x4, scoped, tag = 'scoped memory for tpu_custom_call.1']
    %16 = vsyncpa [#allocation5], 0
    // Predicated region
    $region2: #{tpu_custom_call.1} parent=1 // pred_check
      _
    $region3: #{tpu_custom_call.1} parent=1 // pred_check_branch
      %18 = sbr.rel (0) target = $region5
    $region4: #{tpu_custom_call.1} parent=1 // pred_region
      _
    $region5: #{tpu_custom_call.1} parent=1 // pred_fallthru
      _
    // Predicated region
    $region6: #{tpu_custom_call.1} parent=1 // pred_check
      _
    $region7: #{tpu_custom_call.1} parent=1 // pred_check_branch
      %20 = sbr.rel (0) target = $region9
    $region8: #{tpu_custom_call.1} parent=1 // pred_region
      _
    $region9: #{tpu_custom_call.1} parent=1 // pred_fallthru
      _
    // Predicated region
    $region10: #{tpu_custom_call.1} parent=1 // pred_check
      _
    $region11: #{tpu_custom_call.1} parent=1 // pred_check_branch
      %22 = sbr.rel (0) target = $region13
    $region12: #{tpu_custom_call.1} parent=1 // pred_region
      _
    $region13: #{tpu_custom_call.1} parent=1 // pred_fallthru
      _
    // Predicated region
    $region14: #{tpu_custom_call.1} parent=1 // pred_check
      _
    $region15: #{tpu_custom_call.1} parent=1 // pred_check_branch
      %24 = sbr.rel (0) target = $region17
    $region16: #{tpu_custom_call.1} parent=1 // pred_region
      _
    $region17: #{tpu_custom_call.1} parent=1 // pred_fallthru
      _
    // Predicated region
    $region18: #{tpu_custom_call.1} parent=1 // pred_check
      _
    $region19: #{tpu_custom_call.1} parent=1 // pred_check_branch
      %26 = sbr.rel (0) target = $region21
    $region20: #{tpu_custom_call.1} parent=1 // pred_region
      _
    $region21: #{tpu_custom_call.1} parent=1 // pred_fallthru
      _
    // Predicated region
    $region22: #{tpu_custom_call.1} parent=1 // pred_check
      _
    $region23: #{tpu_custom_call.1} parent=1 // pred_check_branch
      %28 = sbr.rel (0) target = $region25
    $region24: #{tpu_custom_call.1} parent=1 // pred_region
      _
    $region25: #{tpu_custom_call.1} parent=1 // pred_fallthru
      _
    // Predicated region
    $region26: #{tpu_custom_call.1} parent=1 // pred_check
      _
    $region27: #{tpu_custom_call.1} parent=1 // pred_check_branch
      %30 = sbr.rel (0) target = $region29
    $region28: #{tpu_custom_call.1} parent=1 // pred_region
      _
    $region29: #{tpu_custom_call.1} parent=1 // pred_fallthru
      _
    // Predicated region
    $region30: #{tpu_custom_call.1} parent=1 // pred_check
      _
    $region31: #{tpu_custom_call.1} parent=1 // pred_check_branch
      %32 = sbr.rel (0) target = $region33
    $region32: #{tpu_custom_call.1} parent=1 // pred_region
      _
    $region33: #{tpu_custom_call.1} parent=1 // pred_fallthru
      _
    // Predicated region
    $region34: #{tpu_custom_call.1} parent=1 // pred_check
      _
    $region35: #{tpu_custom_call.1} parent=1 // pred_check_branch
      %34 = sbr.rel (0) target = $region37
    $region36: #{tpu_custom_call.1} parent=1 // pred_region
      _
    $region37: #{tpu_custom_call.1} parent=1 // pred_fallthru
      _
    %v36 = vld [vmem:[%s0] sm:$0x77]
    %v37 = vlaneseq
    %v38 = vshrl.u32 %v37, 7
    %v39 = vadd.s32 %v38, 8
    %v40 = vperm.slane %v36, 0
    %v41 = vperm.slane %v36, 4
    %v42 = vperm.slane %v40, 0
    %v43 = vperm.slane %v41, 0
    %vm44 = vcmp.eq.s32.totalorder %v38, %v42
    %vm45 = vcmp.eq.s32.totalorder %v38, %v43
    %vm46 = vcmp.eq.s32.totalorder %v39, %v42
    %vm47 = vcmp.eq.s32.totalorder %v39, %v43
    %v48 = vsel %vm44, 1, 0
    %v49 = vsel %vm45, 1, 0
    %v50 = vsel %vm46, 1, 0
    %v51 = vsel %vm47, 1, 0
    %v52 = vcvt.s32.f32 %v48
    %v53 = vcvt.s32.f32 %v49
    %v54 = vcvt.s32.f32 %v50
    %v55 = vcvt.s32.f32 %v51
    %v56 = vpack.c.bf16 %v53, %v52
    %v57 = vpack.c.bf16 %v55, %v54
    %58 = vst [vmem:[#allocation2] sm:$0xff] %v56
    %59 = vst [vmem:[#allocation2 + $0x8] sm:$0xff] %v57
    %v60 = vperm.slane %v36, 1
    %v61 = vperm.slane %v36, 5
    %v62 = vperm.slane %v60, 1
    %v63 = vperm.slane %v61, 1
    %vm64 = vcmp.eq.s32.totalorder %v38, %v62
    %vm65 = vcmp.eq.s32.totalorder %v38, %v63
    %vm66 = vcmp.eq.s32.totalorder %v39, %v62
    %vm67 = vcmp.eq.s32.totalorder %v39, %v63
    %v68 = vsel %vm64, 1, 0
    %v69 = vsel %vm65, 1, 0
    %v70 = vsel %vm66, 1, 0
    %v71 = vsel %vm67, 1, 0
    %v72 = vcvt.s32.f32 %v68
    %v73 = vcvt.s32.f32 %v69
    %v74 = vcvt.s32.f32 %v70
    %v75 = vcvt.s32.f32 %v71
    %v76 = vpack.c.bf16 %v73, %v72
    %v77 = vpack.c.bf16 %v75, %v74
    %78 = vst [vmem:[#allocation2 + $0x10] sm:$0xff] %v76
    %79 = vst [vmem:[#allocation2 + $0x18] sm:$0xff] %v77
    %v80 = vadd.s32 %v38, 16
    %v81 = vadd.s32 %v38, 24
    %v82 = vadd.s32 %v38, 32
    %v83 = vadd.s32 %v38, 40
    %v84 = vadd.s32 %v38, 48
    %v85 = vadd.s32 %v38, 56
    %v86 = vadd.s32 %v38, 64
    %v87 = vadd.s32 %v38, 72
    %v88 = vadd.s32 %v38, 80
    %v89 = vadd.s32 %v38, 88
    %v90 = vperm.slane %v36, 2
    %v91 = vperm.slane %v36, 6
    %v92 = vperm.slane %v90, 2
    %v93 = vperm.slane %v91, 2
    %vm94 = vcmp.eq.s32.totalorder %v38, %v92
    %vm95 = vcmp.eq.s32.totalorder %v38, %v93
    %vm96 = vcmp.eq.s32.totalorder %v39, %v92
    %vm97 = vcmp.eq.s32.totalorder %v39, %v93
    %vm98 = vcmp.eq.s32.totalorder %v80, %v92
    %vm99 = vcmp.eq.s32.totalorder %v80, %v93
    %vm100 = vcmp.eq.s32.totalorder %v81, %v92
    %vm101 = vcmp.eq.s32.totalorder %v81, %v93
    %vm102 = vcmp.eq.s32.totalorder %v82, %v92
    %vm103 = vcmp.eq.s32.totalorder %v82, %v93
    %vm104 = vcmp.eq.s32.totalorder %v83, %v92
    %vm105 = vcmp.eq.s32.totalorder %v83, %v93
    %vm106 = vcmp.eq.s32.totalorder %v84, %v92
    %vm107 = vcmp.eq.s32.totalorder %v84, %v93
    %vm108 = vcmp.eq.s32.totalorder %v85, %v92
    %vm109 = vcmp.eq.s32.totalorder %v85, %v93
    %vm110 = vcmp.eq.s32.totalorder %v86, %v92
    %vm111 = vcmp.eq.s32.totalorder %v86, %v93
    %vm112 = vcmp.eq.s32.totalorder %v87, %v92
    %vm113 = vcmp.eq.s32.totalorder %v87, %v93
    %vm114 = vcmp.eq.s32.totalorder %v88, %v92
    %vm115 = vcmp.eq.s32.totalorder %v88, %v93
    %vm116 = vcmp.eq.s32.totalorder %v89, %v92
    %vm117 = vcmp.eq.s32.totalorder %v89, %v93
    %v118 = vsel %vm94, 1, 0
    %v119 = vsel %vm95, 1, 0
    %v120 = vsel %vm96, 1, 0
    %v121 = vsel %vm97, 1, 0
    %v122 = vsel %vm98, 1, 0
    %v123 = vsel %vm99, 1, 0
    %v124 = vsel %vm100, 1, 0
    %v125 = vsel %vm101, 1, 0
    %v126 = vsel %vm102, 1, 0
    %v127 = vsel %vm103, 1, 0
    %v128 = vsel %vm104, 1, 0
    %v129 = vsel %vm105, 1, 0
    %v130 = vsel %vm106, 1, 0
    %v131 = vsel %vm107, 1, 0
    %v132 = vsel %vm108, 1, 0
    %v133 = vsel %vm109, 1, 0
    %v134 = vsel %vm110, 1, 0
    %v135 = vsel %vm111, 1, 0
    %v136 = vsel %vm112, 1, 0
    %v137 = vsel %vm113, 1, 0
    %v138 = vsel %vm114, 1, 0
    %v139 = vsel %vm115, 1, 0
    %v140 = vsel %vm116, 1, 0
    %v141 = vsel %vm117, 1, 0
    %v142 = vcvt.s32.f32 %v118
    %v143 = vcvt.s32.f32 %v119
    %v144 = vcvt.s32.f32 %v120
    %v145 = vcvt.s32.f32 %v121
    %v146 = vcvt.s32.f32 %v122
    %v147 = vcvt.s32.f32 %v123
    %v148 = vcvt.s32.f32 %v124
    %v149 = vcvt.s32.f32 %v125
    %v150 = vcvt.s32.f32 %v126
    %v151 = vcvt.s32.f32 %v127
    %v152 = vcvt.s32.f32 %v128
    %v153 = vcvt.s32.f32 %v129
    %v154 = vcvt.s32.f32 %v130
    %v155 = vcvt.s32.f32 %v131
    %v156 = vcvt.s32.f32 %v132
    %v157 = vcvt.s32.f32 %v133
    %v158 = vcvt.s32.f32 %v134
    %v159 = vcvt.s32.f32 %v135
    %v160 = vcvt.s32.f32 %v136
    %v161 = vcvt.s32.f32 %v137
    %v162 = vcvt.s32.f32 %v138
    %v163 = vcvt.s32.f32 %v139
    %v164 = vcvt.s32.f32 %v140
    %v165 = vcvt.s32.f32 %v141
    %v166 = vpack.c.bf16 %v143, %v142
    %v167 = vpack.c.bf16 %v145, %v144
    %v168 = vpack.c.bf16 %v147, %v146
    %v169 = vpack.c.bf16 %v149, %v148
    %v170 = vpack.c.bf16 %v151, %v150
    %v171 = vpack.c.bf16 %v153, %v152
    %v172 = vpack.c.bf16 %v155, %v154
    %v173 = vpack.c.bf16 %v157, %v156
    %v174 = vpack.c.bf16 %v159, %v158
    %v175 = vpack.c.bf16 %v161, %v160
    %v176 = vpack.c.bf16 %v163, %v162
    %v177 = vpack.c.bf16 %v165, %v164
    %178 = vst [vmem:[#allocation2 + $0x20] sm:$0xff] %v166
    %179 = vst [vmem:[#allocation2 + $0x28] sm:$0xff] %v167
    %180 = vst [vmem:[#allocation2 + $0x30] sm:$0xff] %v168
    %181 = vst [vmem:[#allocation2 + $0x38] sm:$0xff] %v169
    %182 = vst [vmem:[#allocation2 + $0x40] sm:$0xff] %v170
    %183 = vst [vmem:[#allocation2 + $0x48] sm:$0xff] %v171
    %184 = vst [vmem:[#allocation2 + $0x50] sm:$0xff] %v172
    %185 = vst [vmem:[#allocation2 + $0x58] sm:$0xff] %v173
    %186 = vst [vmem:[#allocation2 + $0x60] sm:$0xff] %v174
    %187 = vst [vmem:[#allocation2 + $0x68] sm:$0xff] %v175
    %188 = vst [vmem:[#allocation2 + $0x70] sm:$0xff] %v176
    %189 = vst [vmem:[#allocation2 + $0x78] sm:$0xff] %v177
    %v190 = vld [vmem:[%s1] sm:$0xf]
    %v191 = vld [vmem:[%s1 + $0x4] sm:$0xf]
    %v192 = vld [vmem:[%s1 + $0x8] sm:$0xf]
    %v193 = vld [vmem:[%s1 + $0xc] sm:$0xf]
    %v194 = vld [vmem:[%s1 + $0x10] sm:$0xf]
    %v195 = vld [vmem:[%s1 + $0x14] sm:$0xf]
    %v196 = vld [vmem:[%s1 + $0x18] sm:$0xf]
    %v197 = vld [vmem:[%s1 + $0x1c] sm:$0xf]
    %v198 = vld [vmem:[%s1 + $0x20] sm:$0xf]
    %v199 = vld [vmem:[%s1 + $0x24] sm:$0xf]
    %v200 = vld [vmem:[%s1 + $0x28] sm:$0xf]
    %v201 = vld [vmem:[%s1 + $0x2c] sm:$0xf]
    %v202 = vld [vmem:[%s1 + $0x30] sm:$0xf]
    %v203 = vld [vmem:[%s1 + $0x34] sm:$0xf]
    %v204 = vld [vmem:[%s1 + $0x38] sm:$0xf]
    %v205 = vld [vmem:[%s1 + $0x3c] sm:$0xf]
    %v206 = vld [vmem:[#allocation2] sm:$0xff]
    %v207 = vld [vmem:[#allocation2 + $0x8] sm:$0xff]
    %v208 = vld [vmem:[#allocation2 + $0x10] sm:$0xff]
    %v209 = vld [vmem:[#allocation2 + $0x18] sm:$0xff]
    %v210 = vld [vmem:[#allocation2 + $0x20] sm:$0xff]
    %v211 = vld [vmem:[#allocation2 + $0x28] sm:$0xff]
    %v212 = vld [vmem:[#allocation2 + $0x30] sm:$0xff]
    %v213 = vld [vmem:[#allocation2 + $0x38] sm:$0xff]
    %v214 = vld [vmem:[#allocation2 + $0x40] sm:$0xff]
    %v215 = vld [vmem:[#allocation2 + $0x48] sm:$0xff]
    %v216 = vld [vmem:[#allocation2 + $0x50] sm:$0xff]
    %v217 = vld [vmem:[#allocation2 + $0x58] sm:$0xff]
    %v218 = vld [vmem:[#allocation2 + $0x60] sm:$0xff]
    %v219 = vld [vmem:[#allocation2 + $0x68] sm:$0xff]
    %v220 = vld [vmem:[#allocation2 + $0x70] sm:$0xff]
    %v221 = vld [vmem:[#allocation2 + $0x78] sm:$0xff]
    %v222 = vld [vmem:[%s2] sm:$0xff]
    %v223 = vld [vmem:[%s2 + $0x8] sm:$0xff]
    %v224 = vld [vmem:[%s2 + $0x10] sm:$0xff]
    %v225 = vld [vmem:[%s2 + $0x18] sm:$0xff]
    %v226 = vld [vmem:[%s2 + $0x20] sm:$0xff]
    %v227 = vld [vmem:[%s2 + $0x28] sm:$0xff]
    %v228 = vld [vmem:[%s2 + $0x30] sm:$0xff]
    %v229 = vld [vmem:[%s2 + $0x38] sm:$0xff]
    %v230 = vld [vmem:[%s2 + $0x40] sm:$0xff]
    %v231 = vld [vmem:[%s2 + $0x48] sm:$0xff]
    %v232 = vld [vmem:[%s2 + $0x50] sm:$0xff]
    %v233 = vld [vmem:[%s2 + $0x58] sm:$0xff]
    %v234 = vld [vmem:[%s2 + $0x60] sm:$0xff]
    %v235 = vld [vmem:[%s2 + $0x68] sm:$0xff]
    %v236 = vld [vmem:[%s2 + $0x70] sm:$0xff]
    %v237 = vld [vmem:[%s2 + $0x78] sm:$0xff]
    %239 = vset.pattern.permute.xlu0 0
    %240 = vperm.xlu0 %239, %v222
    %v241 = vpop.permute.xlu0 %240
    %244 = vset.pattern.permute.xlu0 0
    %245 = vperm.xlu0 %244, %v223
    %v246 = vpop.permute.xlu0 %245
    %249 = vset.pattern.permute.xlu0 0
    %250 = vperm.xlu0 %249, %v224
    %v251 = vpop.permute.xlu0 %250
    %254 = vset.pattern.permute.xlu0 0
    %255 = vperm.xlu0 %254, %v225
    %v256 = vpop.permute.xlu0 %255
    %259 = vset.pattern.permute.xlu0 0
    %260 = vperm.xlu0 %259, %v226
    %v261 = vpop.permute.xlu0 %260
    %264 = vset.pattern.permute.xlu0 0
    %265 = vperm.xlu0 %264, %v227
    %v266 = vpop.permute.xlu0 %265
    %269 = vset.pattern.permute.xlu0 0
    %270 = vperm.xlu0 %269, %v228
    %v271 = vpop.permute.xlu0 %270
    %274 = vset.pattern.permute.xlu0 0
    %275 = vperm.xlu0 %274, %v229
    %v276 = vpop.permute.xlu0 %275
    %279 = vset.pattern.permute.xlu0 0
    %280 = vperm.xlu0 %279, %v230
    %v281 = vpop.permute.xlu0 %280
    %284 = vset.pattern.permute.xlu0 0
    %285 = vperm.xlu0 %284, %v231
    %v286 = vpop.permute.xlu0 %285
    %289 = vset.pattern.permute.xlu0 0
    %290 = vperm.xlu0 %289, %v232
    %v291 = vpop.permute.xlu0 %290
    %294 = vset.pattern.permute.xlu0 0
    %295 = vperm.xlu0 %294, %v233
    %v296 = vpop.permute.xlu0 %295
    %299 = vset.pattern.permute.xlu0 0
    %300 = vperm.xlu0 %299, %v234
    %v301 = vpop.permute.xlu0 %300
    %304 = vset.pattern.permute.xlu0 0
    %305 = vperm.xlu0 %304, %v235
    %v306 = vpop.permute.xlu0 %305
    %309 = vset.pattern.permute.xlu0 0
    %310 = vperm.xlu0 %309, %v236
    %v311 = vpop.permute.xlu0 %310
    %314 = vset.pattern.permute.xlu0 0
    %315 = vperm.xlu0 %314, %v237
    %v316 = vpop.permute.xlu0 %315
    %v334 = vunpack.c.l.b16 %v190
    %v335 = vunpack.c.l.b16 %v191
    %v336 = vunpack.c.l.b16 %v192
    %v337 = vunpack.c.l.b16 %v193
    %v338 = vunpack.c.l.b16 %v194
    %v339 = vunpack.c.l.b16 %v195
    %v340 = vunpack.c.l.b16 %v196
    %v341 = vunpack.c.l.b16 %v197
    %v342 = vunpack.c.l.b16 %v198
    %v343 = vunpack.c.l.b16 %v199
    %v344 = vunpack.c.l.b16 %v200
    %v345 = vunpack.c.l.b16 %v201
    %v346 = vunpack.c.l.b16 %v202
    %v347 = vunpack.c.l.b16 %v203
    %v348 = vunpack.c.l.b16 %v204
    %v349 = vunpack.c.l.b16 %v205
    %v350 = vpack.c.b16 %v335, %v334
    %v351 = vpack.c.b16 %v337, %v336
    %v352 = vpack.c.b16 %v339, %v338
    %v353 = vpack.c.b16 %v341, %v340
    %v354 = vpack.c.b16 %v343, %v342
    %v355 = vpack.c.b16 %v345, %v344
    %v356 = vpack.c.b16 %v347, %v346
    %v357 = vpack.c.b16 %v349, %v348
    %v382 = vunpack.c.l.b16 %v206
    %v383 = vunpack.c.h.b16 %v206
    %v384 = vunpack.c.l.b16 %v207
    %v385 = vunpack.c.h.b16 %v207
    %v386 = vunpack.c.l.b16 %v208
    %v387 = vunpack.c.h.b16 %v208
    %v388 = vunpack.c.l.b16 %v209
    %v389 = vunpack.c.h.b16 %v209
    %v390 = vunpack.c.l.b16 %v210
    %v391 = vunpack.c.h.b16 %v210
    %v392 = vunpack.c.l.b16 %v211
    %v393 = vunpack.c.h.b16 %v211
    %v394 = vunpack.c.l.b16 %v212
    %v395 = vunpack.c.h.b16 %v212
    %v396 = vunpack.c.l.b16 %v213
    %v397 = vunpack.c.h.b16 %v213
    %v398 = vunpack.c.l.b16 %v214
    %v399 = vunpack.c.h.b16 %v214
    %v400 = vunpack.c.l.b16 %v215
    %v401 = vunpack.c.h.b16 %v215
    %v402 = vunpack.c.l.b16 %v216
    %v403 = vunpack.c.h.b16 %v216
    %v404 = vunpack.c.l.b16 %v217
    %v405 = vunpack.c.h.b16 %v217
    %v406 = vunpack.c.l.b16 %v218
    %v407 = vunpack.c.h.b16 %v218
    %v408 = vunpack.c.l.b16 %v219
    %v409 = vunpack.c.h.b16 %v219
    %v410 = vunpack.c.l.b16 %v220
    %v411 = vunpack.c.h.b16 %v220
    %v412 = vunpack.c.l.b16 %v221
    %v413 = vunpack.c.h.b16 %v221
    %v414 = vpack.c.b16 %v384, %v382
    %v415 = vpack.c.b16 %v385, %v383
    %v416 = vpack.c.b16 %v388, %v386
    %v417 = vpack.c.b16 %v389, %v387
    %v418 = vpack.c.b16 %v392, %v390
    %v419 = vpack.c.b16 %v393, %v391
    %v420 = vpack.c.b16 %v396, %v394
    %v421 = vpack.c.b16 %v397, %v395
    %v422 = vpack.c.b16 %v400, %v398
    %v423 = vpack.c.b16 %v401, %v399
    %v424 = vpack.c.b16 %v404, %v402
    %v425 = vpack.c.b16 %v405, %v403
    %v426 = vpack.c.b16 %v408, %v406
    %v427 = vpack.c.b16 %v409, %v407
    %v428 = vpack.c.b16 %v412, %v410
    %v429 = vpack.c.b16 %v413, %v411
    %446 = vmatpush.bf16.msra.mxu0 %v428
    %447 = vmatpush.bf16.msra.mxu0 %v426
    %448 = vmatpush.bf16.msra.mxu0 %v424
    %449 = vmatpush.bf16.msra.mxu0 %v422
    %450 = vmatpush.bf16.msra.mxu0 %v420
    %451 = vmatpush.bf16.msra.mxu0 %v418
    %452 = vmatpush.bf16.msra.mxu0 %v416
    %453 = vmatpush.bf16.msra.mxu0 %v414
    %454 = vmatmul.bf16.gmra.mxu0 %v350
    %v455 = vpop.f32.mrf.mxu0
    %v456 = vadd.f32 %v241, %v455
    %v457 = vpop.f32.mrf.mxu0
    %v458 = vadd.f32 %v246, %v457
    %459 = vmatmul.bf16.gmra.mxu0 %v351
    %v460 = vpop.f32.mrf.mxu0
    %v461 = vadd.f32 %v251, %v460
    %v462 = vpop.f32.mrf.mxu0
    %v463 = vadd.f32 %v256, %v462
    %464 = vmatmul.bf16.gmra.mxu0 %v352
    %v465 = vpop.f32.mrf.mxu0
    %v466 = vadd.f32 %v261, %v465
    %v467 = vpop.f32.mrf.mxu0
    %v468 = vadd.f32 %v266, %v467
    %469 = vmatmul.bf16.gmra.mxu0 %v353
    %v470 = vpop.f32.mrf.mxu0
    %v471 = vadd.f32 %v271, %v470
    %v472 = vpop.f32.mrf.mxu0
    %v473 = vadd.f32 %v276, %v472
    %474 = vmatmul.bf16.gmra.mxu0 %v354
    %v475 = vpop.f32.mrf.mxu0
    %v476 = vadd.f32 %v281, %v475
    %v477 = vpop.f32.mrf.mxu0
    %v478 = vadd.f32 %v286, %v477
    %479 = vmatmul.bf16.gmra.mxu0 %v355
    %v480 = vpop.f32.mrf.mxu0
    %v481 = vadd.f32 %v291, %v480
    %v482 = vpop.f32.mrf.mxu0
    %v483 = vadd.f32 %v296, %v482
    %484 = vmatmul.bf16.gmra.mxu0 %v356
    %v485 = vpop.f32.mrf.mxu0
    %v486 = vadd.f32 %v301, %v485
    %v487 = vpop.f32.mrf.mxu0
    %v488 = vadd.f32 %v306, %v487
    %489 = vmatmul.bf16.gmra.mxu0 %v357
    %v490 = vpop.f32.mrf.mxu0
    %v491 = vadd.f32 %v311, %v490
    %v492 = vpop.f32.mrf.mxu0
    %v493 = vadd.f32 %v316, %v492
    %494 = vdwg.mxu0
    %495 = vmatpush.bf16.msra.mxu0 %v429
    %496 = vmatpush.bf16.msra.mxu0 %v427
    %497 = vmatpush.bf16.msra.mxu0 %v425
    %498 = vmatpush.bf16.msra.mxu0 %v423
    %499 = vmatpush.bf16.msra.mxu0 %v421
    %500 = vmatpush.bf16.msra.mxu0 %v419
    %501 = vmatpush.bf16.msra.mxu0 %v417
    %502 = vmatpush.bf16.msra.mxu0 %v415
    %503 = vmatmul.bf16.gmra.mxu0 %v350
    %v504 = vpop.f32.mrf.mxu0
    %v505 = vadd.f32 %v241, %v504
    %v506 = vpop.f32.mrf.mxu0
    %v507 = vadd.f32 %v246, %v506
    %508 = vmatmul.bf16.gmra.mxu0 %v351
    %v509 = vpop.f32.mrf.mxu0
    %v510 = vadd.f32 %v251, %v509
    %v511 = vpop.f32.mrf.mxu0
    %v512 = vadd.f32 %v256, %v511
    %513 = vmatmul.bf16.gmra.mxu0 %v352
    %v514 = vpop.f32.mrf.mxu0
    %v515 = vadd.f32 %v261, %v514
    %v516 = vpop.f32.mrf.mxu0
    %v517 = vadd.f32 %v266, %v516
    %518 = vmatmul.bf16.gmra.mxu0 %v353
    %v519 = vpop.f32.mrf.mxu0
    %v520 = vadd.f32 %v271, %v519
    %v521 = vpop.f32.mrf.mxu0
    %v522 = vadd.f32 %v276, %v521
    %523 = vmatmul.bf16.gmra.mxu0 %v354
    %v524 = vpop.f32.mrf.mxu0
    %v525 = vadd.f32 %v281, %v524
    %v526 = vpop.f32.mrf.mxu0
    %v527 = vadd.f32 %v286, %v526
    %528 = vmatmul.bf16.gmra.mxu0 %v355
    %v529 = vpop.f32.mrf.mxu0
    %v530 = vadd.f32 %v291, %v529
    %v531 = vpop.f32.mrf.mxu0
    %v532 = vadd.f32 %v296, %v531
    %533 = vmatmul.bf16.gmra.mxu0 %v356
    %v534 = vpop.f32.mrf.mxu0
    %v535 = vadd.f32 %v301, %v534
    %v536 = vpop.f32.mrf.mxu0
    %v537 = vadd.f32 %v306, %v536
    %538 = vmatmul.bf16.gmra.mxu0 %v357
    %v539 = vpop.f32.mrf.mxu0
    %v540 = vadd.f32 %v311, %v539
    %v541 = vpop.f32.mrf.mxu0
    %v542 = vadd.f32 %v316, %v541
    %543 = vdwg.mxu0
    %v544 = vmax.f32 %v456, 0.0
    %v545 = vmax.f32 %v505, 0.0
    %v546 = vmax.f32 %v458, 0.0
    %v547 = vmax.f32 %v507, 0.0
    %v548 = vmax.f32 %v461, 0.0
    %v549 = vmax.f32 %v510, 0.0
    %v550 = vmax.f32 %v463, 0.0
    %v551 = vmax.f32 %v512, 0.0
    %v552 = vmax.f32 %v466, 0.0
    %v553 = vmax.f32 %v515, 0.0
    %v554 = vmax.f32 %v468, 0.0
    %v555 = vmax.f32 %v517, 0.0
    %v556 = vmax.f32 %v471, 0.0
    %v557 = vmax.f32 %v520, 0.0
    %v558 = vmax.f32 %v473, 0.0
    %v559 = vmax.f32 %v522, 0.0
    %v560 = vmax.f32 %v476, 0.0
    %v561 = vmax.f32 %v525, 0.0
    %v562 = vmax.f32 %v478, 0.0
    %v563 = vmax.f32 %v527, 0.0
    %v564 = vmax.f32 %v481, 0.0
    %v565 = vmax.f32 %v530, 0.0
    %v566 = vmax.f32 %v483, 0.0
    %v567 = vmax.f32 %v532, 0.0
    %v568 = vmax.f32 %v486, 0.0
    %v569 = vmax.f32 %v535, 0.0
    %v570 = vmax.f32 %v488, 0.0
    %v571 = vmax.f32 %v537, 0.0
    %v572 = vmax.f32 %v491, 0.0
    %v573 = vmax.f32 %v540, 0.0
    %v574 = vmax.f32 %v493, 0.0
    %v575 = vmax.f32 %v542, 0.0
    %v576 = vld [vmem:[%s3] sm:$0xf]
    %v577 = vld [vmem:[%s3 + $0x4] sm:$0xf]
    %v578 = vld [vmem:[%s3 + $0x8] sm:$0xf]
    %v579 = vld [vmem:[%s3 + $0xc] sm:$0xf]
    %v580 = vld [vmem:[%s3 + $0x10] sm:$0xf]
    %v581 = vld [vmem:[%s3 + $0x14] sm:$0xf]
    %v582 = vld [vmem:[%s3 + $0x18] sm:$0xf]
    %v583 = vld [vmem:[%s3 + $0x1c] sm:$0xf]
    %v584 = vpack.c.bf16 %v546, %v544
    %v585 = vpack.c.bf16 %v547, %v545
    %v586 = vpack.c.bf16 %v550, %v548
    %v587 = vpack.c.bf16 %v551, %v549
    %v588 = vpack.c.bf16 %v554, %v552
    %v589 = vpack.c.bf16 %v555, %v553
    %v590 = vpack.c.bf16 %v558, %v556
    %v591 = vpack.c.bf16 %v559, %v557
    %v592 = vpack.c.bf16 %v562, %v560
    %v593 = vpack.c.bf16 %v563, %v561
    %v594 = vpack.c.bf16 %v566, %v564
    %v595 = vpack.c.bf16 %v567, %v565
    %v596 = vpack.c.bf16 %v570, %v568
    %v597 = vpack.c.bf16 %v571, %v569
    %v598 = vpack.c.bf16 %v574, %v572
    %v599 = vpack.c.bf16 %v575, %v573
    %v600 = vld [vmem:[%s4] sm:$0xff]
    %v601 = vld [vmem:[%s4 + $0x8] sm:$0xff]
    %v602 = vld [vmem:[%s4 + $0x10] sm:$0xff]
    %v603 = vld [vmem:[%s4 + $0x18] sm:$0xff]
    %v604 = vld [vmem:[%s4 + $0x20] sm:$0xff]
    %v605 = vld [vmem:[%s4 + $0x28] sm:$0xff]
    %v606 = vld [vmem:[%s4 + $0x30] sm:$0xff]
    %v607 = vld [vmem:[%s4 + $0x38] sm:$0xff]
    %609 = vset.pattern.permute.xlu0 0
    %610 = vperm.xlu0 %609, %v600
    %v611 = vpop.permute.xlu0 %610
    %614 = vset.pattern.permute.xlu0 0
    %615 = vperm.xlu0 %614, %v601
    %v616 = vpop.permute.xlu0 %615
    %619 = vset.pattern.permute.xlu0 0
    %620 = vperm.xlu0 %619, %v602
    %v621 = vpop.permute.xlu0 %620
    %624 = vset.pattern.permute.xlu0 0
    %625 = vperm.xlu0 %624, %v603
    %v626 = vpop.permute.xlu0 %625
    %629 = vset.pattern.permute.xlu0 0
    %630 = vperm.xlu0 %629, %v604
    %v631 = vpop.permute.xlu0 %630
    %634 = vset.pattern.permute.xlu0 0
    %635 = vperm.xlu0 %634, %v605
    %v636 = vpop.permute.xlu0 %635
    %639 = vset.pattern.permute.xlu0 0
    %640 = vperm.xlu0 %639, %v606
    %v641 = vpop.permute.xlu0 %640
    %644 = vset.pattern.permute.xlu0 0
    %645 = vperm.xlu0 %644, %v607
    %v646 = vpop.permute.xlu0 %645
    %v656 = vunpack.c.l.b16 %v576
    %v657 = vunpack.c.l.b16 %v577
    %v658 = vunpack.c.l.b16 %v578
    %v659 = vunpack.c.l.b16 %v579
    %v660 = vunpack.c.l.b16 %v580
    %v661 = vunpack.c.l.b16 %v581
    %v662 = vunpack.c.l.b16 %v582
    %v663 = vunpack.c.l.b16 %v583
    %v664 = vpack.c.b16 %v657, %v656
    %v665 = vpack.c.b16 %v659, %v658
    %v666 = vpack.c.b16 %v661, %v660
    %v667 = vpack.c.b16 %v663, %v662
    %672 = vmatpush.bf16.msra.mxu0 %v598
    %673 = vmatpush.bf16.msra.mxu0 %v596
    %674 = vmatpush.bf16.msra.mxu0 %v594
    %675 = vmatpush.bf16.msra.mxu0 %v592
    %676 = vmatpush.bf16.msra.mxu0 %v590
    %677 = vmatpush.bf16.msra.mxu0 %v588
    %678 = vmatpush.bf16.msra.mxu0 %v586
    %679 = vmatpush.bf16.msra.mxu0 %v584
    %680 = vmatmul.bf16.gmra.mxu0 %v664
    %v681 = vpop.f32.mrf.mxu0
    %v682 = vadd.f32 %v611, %v681
    %v683 = vpop.f32.mrf.mxu0
    %v684 = vadd.f32 %v616, %v683
    %685 = vmatmul.bf16.gmra.mxu0 %v665
    %v686 = vpop.f32.mrf.mxu0
    %v687 = vadd.f32 %v621, %v686
    %v688 = vpop.f32.mrf.mxu0
    %v689 = vadd.f32 %v626, %v688
    %690 = vmatmul.bf16.gmra.mxu0 %v666
    %v691 = vpop.f32.mrf.mxu0
    %v692 = vadd.f32 %v631, %v691
    %v693 = vpop.f32.mrf.mxu0
    %v694 = vadd.f32 %v636, %v693
    %695 = vmatmul.bf16.gmra.mxu0 %v667
    %v696 = vpop.f32.mrf.mxu0
    %v697 = vadd.f32 %v641, %v696
    %v698 = vpop.f32.mrf.mxu0
    %v699 = vadd.f32 %v646, %v698
    %700 = vdwg.mxu0
    %701 = vmatpush.bf16.msra.mxu0 %v599
    %702 = vmatpush.bf16.msra.mxu0 %v597
    %703 = vmatpush.bf16.msra.mxu0 %v595
    %704 = vmatpush.bf16.msra.mxu0 %v593
    %705 = vmatpush.bf16.msra.mxu0 %v591
    %706 = vmatpush.bf16.msra.mxu0 %v589
    %707 = vmatpush.bf16.msra.mxu0 %v587
    %708 = vmatpush.bf16.msra.mxu0 %v585
    %709 = vmatmul.bf16.gmra.mxu0 %v664
    %v710 = vpop.f32.mrf.mxu0
    %v711 = vadd.f32 %v611, %v710
    %v712 = vpop.f32.mrf.mxu0
    %v713 = vadd.f32 %v616, %v712
    %714 = vmatmul.bf16.gmra.mxu0 %v665
    %v715 = vpop.f32.mrf.mxu0
    %v716 = vadd.f32 %v621, %v715
    %v717 = vpop.f32.mrf.mxu0
    %v718 = vadd.f32 %v626, %v717
    %719 = vmatmul.bf16.gmra.mxu0 %v666
    %v720 = vpop.f32.mrf.mxu0
    %v721 = vadd.f32 %v631, %v720
    %v722 = vpop.f32.mrf.mxu0
    %v723 = vadd.f32 %v636, %v722
    %724 = vmatmul.bf16.gmra.mxu0 %v667
    %v725 = vpop.f32.mrf.mxu0
    %v726 = vadd.f32 %v641, %v725
    %v727 = vpop.f32.mrf.mxu0
    %v728 = vadd.f32 %v646, %v727
    %729 = vdwg.mxu0
    %v730 = vmax.f32 %v682, 0.0
    %v731 = vmax.f32 %v711, 0.0
    %v732 = vmax.f32 %v684, 0.0
    %v733 = vmax.f32 %v713, 0.0
    %v734 = vmax.f32 %v687, 0.0
    %v735 = vmax.f32 %v716, 0.0
    %v736 = vmax.f32 %v689, 0.0
    %v737 = vmax.f32 %v718, 0.0
    %v738 = vmax.f32 %v692, 0.0
    %v739 = vmax.f32 %v721, 0.0
    %v740 = vmax.f32 %v694, 0.0
    %v741 = vmax.f32 %v723, 0.0
    %v742 = vmax.f32 %v697, 0.0
    %v743 = vmax.f32 %v726, 0.0
    %v744 = vmax.f32 %v699, 0.0
    %v745 = vmax.f32 %v728, 0.0
    %v746 = vld [vmem:[%s5] sm:$0xf]
    %v747 = vld [vmem:[%s5 + $0x4] sm:$0xf]
    %v748 = vld [vmem:[%s5 + $0x8] sm:$0xf]
    %v749 = vld [vmem:[%s5 + $0xc] sm:$0xf]
    %v750 = vpack.c.bf16 %v732, %v730
    %v751 = vpack.c.bf16 %v733, %v731
    %v752 = vpack.c.bf16 %v736, %v734
    %v753 = vpack.c.bf16 %v737, %v735
    %v754 = vpack.c.bf16 %v740, %v738
    %v755 = vpack.c.bf16 %v741, %v739
    %v756 = vpack.c.bf16 %v744, %v742
    %v757 = vpack.c.bf16 %v745, %v743
    %v758 = vld [vmem:[%s6] sm:$0xff]
    %v759 = vld [vmem:[%s6 + $0x8] sm:$0xff]
    %v760 = vld [vmem:[%s6 + $0x10] sm:$0xff]
    %v761 = vld [vmem:[%s6 + $0x18] sm:$0xff]
    %763 = vset.pattern.permute.xlu0 0
    %764 = vperm.xlu0 %763, %v758
    %v765 = vpop.permute.xlu0 %764
    %768 = vset.pattern.permute.xlu0 0
    %769 = vperm.xlu0 %768, %v759
    %v770 = vpop.permute.xlu0 %769
    %773 = vset.pattern.permute.xlu0 0
    %774 = vperm.xlu0 %773, %v760
    %v775 = vpop.permute.xlu0 %774
    %778 = vset.pattern.permute.xlu0 0
    %779 = vperm.xlu0 %778, %v761
    %v780 = vpop.permute.xlu0 %779
    %v786 = vunpack.c.l.b16 %v746
    %v787 = vunpack.c.l.b16 %v747
    %v788 = vunpack.c.l.b16 %v748
    %v789 = vunpack.c.l.b16 %v749
    %v790 = vpack.c.b16 %v787, %v786
    %v791 = vpack.c.b16 %v789, %v788
    %vm792 = vcmask 523264
    %v794 = vsel %vm792, %v790, 0
    %v797 = vsel %vm792, %v791, 0
    %799 = vmatpush.bf16.msra.mxu0 0
    %800 = vmatpush.bf16.msra.mxu0 0
    %801 = vmatpush.bf16.msra.mxu0 0
    %802 = vmatpush.bf16.msra.mxu0 0
    %803 = vmatpush.bf16.msra.mxu0 %v756
    %804 = vmatpush.bf16.msra.mxu0 %v754
    %805 = vmatpush.bf16.msra.mxu0 %v752
    %806 = vmatpush.bf16.msra.mxu0 %v750
    %807 = vmatmul.bf16.gmra.mxu0 %v794
    %v808 = vpop.f32.mrf.mxu0
    %v809 = vadd.f32 %v765, %v808
    %v810 = vpop.f32.mrf.mxu0
    %v811 = vadd.f32 %v770, %v810
    %812 = vmatmul.bf16.gmra.mxu0 %v797
    %v813 = vpop.f32.mrf.mxu0
    %v814 = vadd.f32 %v775, %v813
    %v815 = vpop.f32.mrf.mxu0
    %v816 = vadd.f32 %v780, %v815
    %817 = vdwg.mxu0
    %818 = vmatpush.bf16.msra.mxu0 0
    %819 = vmatpush.bf16.msra.mxu0 0
    %820 = vmatpush.bf16.msra.mxu0 0
    %821 = vmatpush.bf16.msra.mxu0 0
    %822 = vmatpush.bf16.msra.mxu0 %v757
    %823 = vmatpush.bf16.msra.mxu0 %v755
    %824 = vmatpush.bf16.msra.mxu0 %v753
    %825 = vmatpush.bf16.msra.mxu0 %v751
    %826 = vmatmul.bf16.gmra.mxu0 %v794
    %v827 = vpop.f32.mrf.mxu0
    %v828 = vadd.f32 %v765, %v827
    %v829 = vpop.f32.mrf.mxu0
    %v830 = vadd.f32 %v770, %v829
    %831 = vmatmul.bf16.gmra.mxu0 %v797
    %v832 = vpop.f32.mrf.mxu0
    %v833 = vadd.f32 %v775, %v832
    %v834 = vpop.f32.mrf.mxu0
    %v835 = vadd.f32 %v780, %v834
    %836 = vdwg.mxu0
    %v837 = vmax.f32 %v809, 0.0
    %v838 = vmax.f32 %v828, 0.0
    %v839 = vmax.f32 %v811, 0.0
    %v840 = vmax.f32 %v830, 0.0
    %v841 = vmax.f32 %v814, 0.0
    %v842 = vmax.f32 %v833, 0.0
    %v843 = vmax.f32 %v816, 0.0
    %v844 = vmax.f32 %v835, 0.0
    %v845 = vld [vmem:[%s7] sm:$0xff]
    %v846 = vld [vmem:[%s7 + $0x8] sm:$0xff]
    %v847 = vld [vmem:[%s7 + $0x10] sm:$0xff]
    %v848 = vld [vmem:[%s7 + $0x18] sm:$0xff]
    %850 = vset.pattern.permute.xlu0 0
    %851 = vperm.xlu0 %850, %v845
    %v852 = vpop.permute.xlu0 %851
    %855 = vset.pattern.permute.xlu0 0
    %856 = vperm.xlu0 %855, %v846
    %v857 = vpop.permute.xlu0 %856
    %860 = vset.pattern.permute.xlu0 0
    %861 = vperm.xlu0 %860, %v847
    %v862 = vpop.permute.xlu0 %861
    %865 = vset.pattern.permute.xlu0 0
    %866 = vperm.xlu0 %865, %v848
    %v867 = vpop.permute.xlu0 %866
    %v869 = vmul.f32 %v852, %v837
    %v870 = vmul.f32 %v852, %v838
    %v871 = vmul.f32 %v857, %v839
    %v872 = vmul.f32 %v857, %v840
    %v873 = vmul.f32 %v862, %v841
    %v874 = vmul.f32 %v862, %v842
    %v875 = vmul.f32 %v867, %v843
    %v876 = vmul.f32 %v867, %v844
    %v877 = vadd.f32 %v869, %v871
    %v878 = vadd.f32 %v877, %v873
    %v879 = vadd.f32 %v878, %v875
    %v880 = vrot.slane %v879, 4
    %v881 = vadd.f32 %v879, %v880
    %v882 = vrot.slane %v881, 2
    %v883 = vadd.f32 %v881, %v882
    %v884 = vrot.slane %v883, 1
    %v885 = vadd.f32 %v883, %v884
    %v886 = vadd.f32 %v870, %v872
    %v887 = vadd.f32 %v886, %v874
    %v888 = vadd.f32 %v887, %v876
    %v889 = vrot.slane %v888, 4
    %v890 = vadd.f32 %v888, %v889
    %v891 = vrot.slane %v890, 2
    %v892 = vadd.f32 %v890, %v891
    %v893 = vrot.slane %v892, 1
    %v894 = vadd.f32 %v892, %v893
    %v895 = vld [vmem:[#allocation3] sm:$0x1]
    %897 = vset.pattern.permute.xlu0 0
    %898 = vperm.xlu0 %897, %v895
    %v899 = vpop.permute.xlu0 %898
    %v901 = vperm.slane %v899, 0
    %v902 = vadd.f32 %v885, %v901
    %v903 = vadd.f32 %v894, %v901
    %v904 = vxor.u32 %v902, 2147483648
    %v905 = vxor.u32 %v903, 2147483648
    %v906 = vmul.f32 %v904, 1.442695
    %v907 = vpow.pop %v906
    %v908 = vmul.f32 %v905, 1.442695
    %v909 = vpow.pop %v908
    %v910 = vadd.f32 %v907, 1.0
    %v911 = vadd.f32 %v909, 1.0
    %v912 = vrcp.pop %v910
    %v913 = vmul.f32 %v910, %v912
    %v914 = vsub.f32 1.0, %v913
    %v915 = vmul.f32 %v912, %v914
    %v916 = vadd.f32 %v912, %v915
    %vm917 = vweird.f32 %v910
    %vm918 = vweird.f32 %v912
    %vm919 = vmor %vm917, %vm918
    %v920 = vsel %vm919, %v912, %v916
    %v921 = vand.u32 2147483647, %v910
    %vm922 = vcmp.eq.f32.partialorder %v921, 8.507059e+37
    %v923 = vand.u32 %v910, 2147483648
    %v924 = vor.u32 1.1754944e-38, %v923
    %v925 = vsel %vm922, %v924, %v920
    %v926 = vmul.f32 1.0, %v925
    %v927 = vrcp.pop %v911
    %v928 = vmul.f32 %v911, %v927
    %v929 = vsub.f32 1.0, %v928
    %v930 = vmul.f32 %v927, %v929
    %v931 = vadd.f32 %v927, %v930
    %vm932 = vweird.f32 %v911
    %vm933 = vweird.f32 %v927
    %vm934 = vmor %vm932, %vm933
    %v935 = vsel %vm934, %v927, %v931
    %v936 = vand.u32 2147483647, %v911
    %vm937 = vcmp.eq.f32.partialorder %v936, 8.507059e+37
    %v938 = vand.u32 %v911, 2147483648
    %v939 = vor.u32 1.1754944e-38, %v938
    %v940 = vsel %vm937, %v939, %v935
    %v941 = vmul.f32 1.0, %v940
    %v944 = vrot.slane %v941, 7
    %vm945 = vcmask 1040384
    %v946 = vsel %vm945, %v926, %v944
    %v948 = vlaneseq
    %vm949 = vcmp.ge.s32.totalorder %v948, 0
    %vm950 = vcmp.lt.s32.totalorder %v948, 256
    %vm951 = vmand %vm949, %vm950
    %952 = vst.msk [vmem:[#allocation4] sm:$0x3] %vm951, %v946
    // Predicated region
    $region38: #{tpu_custom_call.1} parent=1 // pred_check
      _
    $region39: #{tpu_custom_call.1} parent=1 // pred_check_branch
      %954 = sbr.rel (0) target = $region41
    $region40: #{tpu_custom_call.1} parent=1 // pred_region
      %956 = vsyncadd [#allocation5], 0
      %s958 = sshll.u32 [#allocation4], 4
      %s959 = int_to_ptr.vmem [resolvable:$true] %s958
      %s960 = sshll.u32 %s9, 4
      %s961 = int_to_ptr.hbm [resolvable:$true] %s960
      %963 = dma.vmem_to_hbm [thread:$0]  %s959, 32, %s961, [#allocation5]
    $region41: #{tpu_custom_call.1} parent=1 // pred_fallthru
      _
    // Predicated region
    $region42: #{tpu_custom_call.1} parent=1 // pred_check
      _
    $region43: #{tpu_custom_call.1} parent=1 // pred_check_branch
      %965 = sbr.rel (0) target = $region45
    $region44: #{tpu_custom_call.1} parent=1 // pred_region
      %967 = dma.done [#allocation5], 32
    $region45: #{tpu_custom_call.1} parent=1 // pred_fallthru
      _
    %968 = vsyncpa [#allocation5], 1

</llo_original>
